<compile_context>
chip_gen: v7x
topology: tpu7x:2x2x1
jax: 0.10.0
libtpu: 0.0.40
codegen_flags: <defaults>
</compile_context>

<pallas_src>
import functools

import jax
import jax.numpy as jnp
import numpy as np
from jax import lax
from jax.experimental import pallas as pl
from jax.experimental.pallas import tpu as pltpu


def _gru_kernel(x_ref, wi_ref, wh_ref, b_ref, ln_ref, fcw_ref, fcb_ref,
                out_ref, xp_ref, hs_ref, *, seq_len, batch, hidden):
    T, B, H = seq_len, batch, hidden

    # ---- Prologue: hoisted input projection (one MXU-shaped matmul) ----
    # (T*B, I) @ (I, 3H) + b_i  -> (T*B, 3H)
    xp_ref[...] = (jnp.dot(x_ref[...], wi_ref[...],
                           preferred_element_type=jnp.float32)
                   + b_ref[0:1, :])

    w_h = wh_ref[...]            # (H, 3H), resident across the time loop
    b_h = b_ref[1:2, :]          # (1, 3H)

    # ---- Recurrence: only h_prev @ W_h + gate math on the serial path ----
    def step(t, h_prev):
        row = pl.multiple_of(t * B, 8)
        gx = xp_ref[pl.ds(row, B), :]                             # (B, 3H)
        gh = jnp.dot(h_prev, w_h,
                     preferred_element_type=jnp.float32) + b_h    # (B, 3H)
        r = jax.nn.sigmoid(gx[:, 0 * H:1 * H] + gh[:, 0 * H:1 * H])
        z = jax.nn.sigmoid(gx[:, 1 * H:2 * H] + gh[:, 1 * H:2 * H])
        n = jnp.tanh(gx[:, 2 * H:3 * H] + r * gh[:, 2 * H:3 * H])
        h_new = n + z * (h_prev - n)          # == (1 - z) * n + z * h_prev
        hs_ref[pl.ds(row, B), :] = h_new
        return h_new

    lax.fori_loop(0, T, step, jnp.zeros((B, H), jnp.float32), unroll=True)

    # ---- Epilogue (off the serial path): LayerNorm -> Linear -> Sigmoid ----
    h_all = hs_ref[...]                                   # (T*B, H)
    mean = jnp.mean(h_all, axis=-1, keepdims=True)
    var = jnp.mean((h_all - mean) ** 2, axis=-1, keepdims=True)
    y = (h_all - mean) * lax.rsqrt(var + 1e-5)            # eps matches nn.LayerNorm
    y = y * ln_ref[0:1, :] + ln_ref[1:2, :]
    # TODO(synk): Dropout is identity in eval/inference mode; not applied here.
    logits = jnp.dot(y, fcw_ref[...],
                     preferred_element_type=jnp.float32) + fcb_ref[...]
    out_ref[...] = jax.nn.sigmoid(logits)


def gru_model_forward(x, params):
    """x: (T, B, I) float32.  Returns (T, B, O) float32."""
    T, B, I = x.shape
    H = params["whr"].shape[0]
    O = params["fcw"].shape[1]

    # Fuse gate weights / pack biases (one-time parameter plumbing).
    wi = jnp.concatenate([params["wir"], params["wiz"], params["win"]], axis=1)  # (I,3H)
    wh = jnp.concatenate([params["whr"], params["whz"], params["whn"]], axis=1)  # (H,3H)
    b = jnp.concatenate([
        jnp.concatenate([params["bir"], params["biz"], params["bin"]], axis=1),
        jnp.concatenate([params["bhr"], params["bhz"], params["bhn"]], axis=1),
    ], axis=0)                                                                    # (2,3H)
    ln = jnp.concatenate([params["lnw"], params["lnb"]], axis=0)                  # (2,H)

    # Pad batch up to the f32 sublane multiple (8) for dense vreg / MXU rows.
    B_pad = ((B + 7) // 8) * 8
    if B_pad != B:
        x = jnp.pad(x, ((0, 0), (0, B_pad - B), (0, 0)))
    x2 = x.reshape(T * B_pad, I)

    vmem = pl.BlockSpec(memory_space=pltpu.MemorySpace.VMEM)

    kernel = pl.pallas_call(
        functools.partial(_gru_kernel, seq_len=T, batch=B_pad, hidden=H),
        out_shape=jax.ShapeDtypeStruct((T * B_pad, O), jnp.float32),
        in_specs=[vmem] * 7,
        out_specs=vmem,
        scratch_shapes=[
            pltpu.VMEM((T * B_pad, 3 * H), jnp.float32),   # hoisted x-projection
            pltpu.VMEM((T * B_pad, H), jnp.float32),       # all hidden states
        ],
    )

    out = kernel(x2, wi, wh, b, ln, params["fcw"], params["fcb"])
    return out.reshape(T, B_pad, O)[:, :B, :]


def gru_model_reference(x, params):
    """Pure JAX reference with identical semantics (PyTorch GRU/LayerNorm)."""
    T, B, I = x.shape
    H = params["whr"].shape[0]

    def step(h, x_t):
        r = jax.nn.sigmoid(x_t @ params["wir"] + params["bir"] +
                           h @ params["whr"] + params["bhr"])
        z = jax.nn.sigmoid(x_t @ params["wiz"] + params["biz"] +
                           h @ params["whz"] + params["bhz"])
        n = jnp.tanh(x_t @ params["win"] + params["bin"] +
                     r * (h @ params["whn"] + params["bhn"]))
        h_new = (1.0 - z) * n + z * h
        return h_new, h_new

    _, hs = jax.lax.scan(step, jnp.zeros((B, H), jnp.float32), x)   # (T,B,H)
    mean = jnp.mean(hs, axis=-1, keepdims=True)
    var = jnp.mean((hs - mean) ** 2, axis=-1, keepdims=True)
    y = (hs - mean) * jax.lax.rsqrt(var + 1e-5)
    y = y * params["lnw"][None] + params["lnb"][None]
    logits = jnp.einsum("tbh,ho->tbo", y, params["fcw"]) + params["fcb"][None]
    return jax.nn.sigmoid(logits)


def make_params(key, input_size, hidden_size, output_size):
    """Deterministic synthetic parameters (PyTorch-style uniform init)."""
    bound = 1.0 / np.sqrt(hidden_size)
    keys = jax.random.split(key, 16)
    u = lambda k, shape: jax.random.uniform(
        k, shape, jnp.float32, minval=-bound, maxval=bound)
    H, I, O = hidden_size, input_size, output_size
    return {
        # GRU weights stored pre-transposed for (B, *) @ (*, H) matmuls.
        "wir": u(keys[0], (I, H)), "wiz": u(keys[1], (I, H)), "win": u(keys[2], (I, H)),
        "whr": u(keys[3], (H, H)), "whz": u(keys[4], (H, H)), "whn": u(keys[5], (H, H)),
        "bir": u(keys[6], (1, H)), "biz": u(keys[7], (1, H)), "bin": u(keys[8], (1, H)),
        "bhr": u(keys[9], (1, H)), "bhz": u(keys[10], (1, H)), "bhn": u(keys[11], (1, H)),
        # LayerNorm affine (PyTorch default init: ones / zeros).
        "lnw": jnp.ones((1, H), jnp.float32),
        "lnb": jnp.zeros((1, H), jnp.float32),
        # Linear (H -> O), pre-transposed.
        "fcw": u(keys[12], (H, O)),
        "fcb": u(keys[13], (1, O)),
    }


if __name__ == "__main__":
    T, B, I, H, O = 8, 4, 16, 32, 8   # seq, batch, input, hidden, output

    key = jax.random.PRNGKey(0)
    k_x, k_p = jax.random.split(key)
    x = jax.random.normal(k_x, (T, B, I), jnp.float32)
    params = make_params(k_p, I, H, O)

    out = gru_model_forward(x, params)
    out = jax.block_until_ready(out)

    ref = jax.block_until_ready(gru_model_reference(x, params))
    np.testing.assert_allclose(np.asarray(out), np.asarray(ref),
                               rtol=1e-5, atol=1e-5)

    assert out.shape == (T, B, O)
    print("KERNEL_OK")
</pallas_src>

<mosaic_0001>
module attributes {stable_mosaic.version = 11 : i64} {
  func.func @_gru_kernel(%arg0: memref<64x16xf32, #tpu.memory_space<vmem>>, %arg1: memref<16x96xf32, #tpu.memory_space<vmem>>, %arg2: memref<32x96xf32, #tpu.memory_space<vmem>>, %arg3: memref<2x96xf32, #tpu.memory_space<vmem>>, %arg4: memref<2x32xf32, #tpu.memory_space<vmem>>, %arg5: memref<32x8xf32, #tpu.memory_space<vmem>>, %arg6: memref<1x8xf32, #tpu.memory_space<vmem>>, %arg7: memref<64x8xf32, #tpu.memory_space<vmem>>, %arg8: memref<64x96xf32, #tpu.memory_space<vmem>>, %arg9: memref<64x32xf32, #tpu.memory_space<vmem>>) attributes {dimension_semantics = [], scalar_prefetch = 0 : i64, scratch_operands = 2 : i64, tpu.core_type = #tpu.core_type<tc>} {
    %c0 = arith.constant 0 : index
    %c0_0 = arith.constant 0 : index
    %0 = vector.load %arg0[%c0, %c0_0] : memref<64x16xf32, #tpu.memory_space<vmem>>, vector<64x16xf32>
    %c0_1 = arith.constant 0 : index
    %c0_2 = arith.constant 0 : index
    %1 = vector.load %arg1[%c0_1, %c0_2] : memref<16x96xf32, #tpu.memory_space<vmem>>, vector<16x96xf32>
    %cst = arith.constant dense<0.000000e+00> : vector<64x96xf32>
    %2 = tpu.matmul %0, %1, %cst {dimension_numbers = #tpu.dot_dimension_numbers<[1], [0], [0], [1], [0, 0, 1, 1], [], []>} : vector<64x16xf32>, vector<16x96xf32>, vector<64x96xf32> -> vector<64x96xf32>
    %c0_3 = arith.constant 0 : index
    %c0_4 = arith.constant 0 : index
    %3 = vector.load %arg3[%c0_3, %c0_4] : memref<2x96xf32, #tpu.memory_space<vmem>>, vector<1x96xf32>
    %4 = vector.broadcast %3 : vector<1x96xf32> to vector<64x96xf32>
    %5 = arith.addf %2, %4 : vector<64x96xf32>
    %c0_5 = arith.constant 0 : index
    %c0_6 = arith.constant 0 : index
    %6 = vector.load %arg8[%c0_5, %c0_6] : memref<64x96xf32, #tpu.memory_space<vmem>>, vector<64x96xf32>
    tpu.vector_store %arg8[%c0_5, %c0_6], %5 {strides = array<i32>} : memref<64x96xf32, #tpu.memory_space<vmem>>, vector<64x96xf32>,
    %c0_7 = arith.constant 0 : index
    %c0_8 = arith.constant 0 : index
    %7 = vector.load %arg2[%c0_7, %c0_8] : memref<32x96xf32, #tpu.memory_space<vmem>>, vector<32x96xf32>
    %c1 = arith.constant 1 : index
    %c0_9 = arith.constant 0 : index
    %8 = vector.load %arg3[%c1, %c0_9] : memref<2x96xf32, #tpu.memory_space<vmem>>, vector<1x96xf32>
    %cst_10 = arith.constant 0.000000e+00 : f32
    %9 = vector.broadcast %cst_10 : f32 to vector<8x32xf32>
    %c0_i32 = arith.constant 0 : i32
    %c8_i32 = arith.constant 8 : i32
    %10 = arith.muli %c0_i32, %c8_i32 : i32
    %11 = tpu.assume_multiple %10, 8 : i32
    %12 = arith.index_cast %11 : i32 to index
    %c0_11 = arith.constant 0 : index
    %13 = vector.load %arg8[%12, %c0_11] : memref<64x96xf32, #tpu.memory_space<vmem>>, vector<8x96xf32>
    %cst_12 = arith.constant dense<0.000000e+00> : vector<8x96xf32>
    %14 = tpu.matmul %9, %7, %cst_12 {dimension_numbers = #tpu.dot_dimension_numbers<[1], [0], [0], [1], [0, 0, 1, 1], [], []>} : vector<8x32xf32>, vector<32x96xf32>, vector<8x96xf32> -> vector<8x96xf32>
    %15 = vector.broadcast %8 : vector<1x96xf32> to vector<8x96xf32>
    %16 = arith.addf %14, %15 : vector<8x96xf32>
    %17 = vector.extract_strided_slice %13 {offsets = [0, 0], sizes = [8, 32], strides = [1, 1]} : vector<8x96xf32> to vector<8x32xf32>
    %18 = vector.extract_strided_slice %16 {offsets = [0, 0], sizes = [8, 32], strides = [1, 1]} : vector<8x96xf32> to vector<8x32xf32>
    %19 = arith.addf %17, %18 : vector<8x32xf32>
    %20 = arith.negf %19 : vector<8x32xf32>
    %21 = math.exp %20 : vector<8x32xf32>
    %cst_13 = arith.constant 1.000000e+00 : f32
    %22 = vector.broadcast %cst_13 : f32 to vector<8x32xf32>
    %23 = arith.addf %22, %21 : vector<8x32xf32>
    %24 = arith.divf %22, %23 : vector<8x32xf32>
    %25 = vector.extract_strided_slice %13 {offsets = [0, 32], sizes = [8, 32], strides = [1, 1]} : vector<8x96xf32> to vector<8x32xf32>
    %26 = vector.extract_strided_slice %16 {offsets = [0, 32], sizes = [8, 32], strides = [1, 1]} : vector<8x96xf32> to vector<8x32xf32>
    %27 = arith.addf %25, %26 : vector<8x32xf32>
    %28 = arith.negf %27 : vector<8x32xf32>
    %29 = math.exp %28 : vector<8x32xf32>
    %cst_14 = arith.constant 1.000000e+00 : f32
    %30 = vector.broadcast %cst_14 : f32 to vector<8x32xf32>
    %31 = arith.addf %30, %29 : vector<8x32xf32>
    %32 = arith.divf %30, %31 : vector<8x32xf32>
    %33 = vector.extract_strided_slice %13 {offsets = [0, 64], sizes = [8, 32], strides = [1, 1]} : vector<8x96xf32> to vector<8x32xf32>
    %34 = vector.extract_strided_slice %16 {offsets = [0, 64], sizes = [8, 32], strides = [1, 1]} : vector<8x96xf32> to vector<8x32xf32>
    %35 = arith.mulf %24, %34 : vector<8x32xf32>
    %36 = arith.addf %33, %35 : vector<8x32xf32>
    %37 = math.tanh %36 : vector<8x32xf32>
    %38 = arith.subf %9, %37 : vector<8x32xf32>
    %39 = arith.mulf %32, %38 : vector<8x32xf32>
    %40 = arith.addf %37, %39 : vector<8x32xf32>
    %41 = arith.index_cast %11 : i32 to index
    %c0_15 = arith.constant 0 : index
    %42 = vector.load %arg9[%41, %c0_15] : memref<64x32xf32, #tpu.memory_space<vmem>>, vector<8x32xf32>
    tpu.vector_store %arg9[%41, %c0_15], %40 {strides = array<i32>} : memref<64x32xf32, #tpu.memory_space<vmem>>, vector<8x32xf32>,
    %c1_i32 = arith.constant 1 : i32
    %c8_i32_16 = arith.constant 8 : i32
    %43 = arith.muli %c1_i32, %c8_i32_16 : i32
    %44 = tpu.assume_multiple %43, 8 : i32
    %45 = arith.index_cast %44 : i32 to index
    %c0_17 = arith.constant 0 : index
    %46 = vector.load %arg8[%45, %c0_17] : memref<64x96xf32, #tpu.memory_space<vmem>>, vector<8x96xf32>
    %cst_18 = arith.constant dense<0.000000e+00> : vector<8x96xf32>
    %47 = tpu.matmul %40, %7, %cst_18 {dimension_numbers = #tpu.dot_dimension_numbers<[1], [0], [0], [1], [0, 0, 1, 1], [], []>} : vector<8x32xf32>, vector<32x96xf32>, vector<8x96xf32> -> vector<8x96xf32>
    %48 = vector.broadcast %8 : vector<1x96xf32> to vector<8x96xf32>
    %49 = arith.addf %47, %48 : vector<8x96xf32>
    %50 = vector.extract_strided_slice %46 {offsets = [0, 0], sizes = [8, 32], strides = [1, 1]} : vector<8x96xf32> to vector<8x32xf32>
    %51 = vector.extract_strided_slice %49 {offsets = [0, 0], sizes = [8, 32], strides = [1, 1]} : vector<8x96xf32> to vector<8x32xf32>
    %52 = arith.addf %50, %51 : vector<8x32xf32>
    %53 = arith.negf %52 : vector<8x32xf32>
    %54 = math.exp %53 : vector<8x32xf32>
    %cst_19 = arith.constant 1.000000e+00 : f32
    %55 = vector.broadcast %cst_19 : f32 to vector<8x32xf32>
    %56 = arith.addf %55, %54 : vector<8x32xf32>
    %57 = arith.divf %55, %56 : vector<8x32xf32>
    %58 = vector.extract_strided_slice %46 {offsets = [0, 32], sizes = [8, 32], strides = [1, 1]} : vector<8x96xf32> to vector<8x32xf32>
    %59 = vector.extract_strided_slice %49 {offsets = [0, 32], sizes = [8, 32], strides = [1, 1]} : vector<8x96xf32> to vector<8x32xf32>
    %60 = arith.addf %58, %59 : vector<8x32xf32>
    %61 = arith.negf %60 : vector<8x32xf32>
    %62 = math.exp %61 : vector<8x32xf32>
    %cst_20 = arith.constant 1.000000e+00 : f32
    %63 = vector.broadcast %cst_20 : f32 to vector<8x32xf32>
    %64 = arith.addf %63, %62 : vector<8x32xf32>
    %65 = arith.divf %63, %64 : vector<8x32xf32>
    %66 = vector.extract_strided_slice %46 {offsets = [0, 64], sizes = [8, 32], strides = [1, 1]} : vector<8x96xf32> to vector<8x32xf32>
    %67 = vector.extract_strided_slice %49 {offsets = [0, 64], sizes = [8, 32], strides = [1, 1]} : vector<8x96xf32> to vector<8x32xf32>
    %68 = arith.mulf %57, %67 : vector<8x32xf32>
    %69 = arith.addf %66, %68 : vector<8x32xf32>
    %70 = math.tanh %69 : vector<8x32xf32>
    %71 = arith.subf %40, %70 : vector<8x32xf32>
    %72 = arith.mulf %65, %71 : vector<8x32xf32>
    %73 = arith.addf %70, %72 : vector<8x32xf32>
    %74 = arith.index_cast %44 : i32 to index
    %c0_21 = arith.constant 0 : index
    %75 = vector.load %arg9[%74, %c0_21] : memref<64x32xf32, #tpu.memory_space<vmem>>, vector<8x32xf32>
    tpu.vector_store %arg9[%74, %c0_21], %73 {strides = array<i32>} : memref<64x32xf32, #tpu.memory_space<vmem>>, vector<8x32xf32>,
    %c2_i32 = arith.constant 2 : i32
    %c8_i32_22 = arith.constant 8 : i32
    %76 = arith.muli %c2_i32, %c8_i32_22 : i32
    %77 = tpu.assume_multiple %76, 8 : i32
    %78 = arith.index_cast %77 : i32 to index
    %c0_23 = arith.constant 0 : index
    %79 = vector.load %arg8[%78, %c0_23] : memref<64x96xf32, #tpu.memory_space<vmem>>, vector<8x96xf32>
    %cst_24 = arith.constant dense<0.000000e+00> : vector<8x96xf32>
    %80 = tpu.matmul %73, %7, %cst_24 {dimension_numbers = #tpu.dot_dimension_numbers<[1], [0], [0], [1], [0, 0, 1, 1], [], []>} : vector<8x32xf32>, vector<32x96xf32>, vector<8x96xf32> -> vector<8x96xf32>
    %81 = vector.broadcast %8 : vector<1x96xf32> to vector<8x96xf32>
    %82 = arith.addf %80, %81 : vector<8x96xf32>
    %83 = vector.extract_strided_slice %79 {offsets = [0, 0], sizes = [8, 32], strides = [1, 1]} : vector<8x96xf32> to vector<8x32xf32>
    %84 = vector.extract_strided_slice %82 {offsets = [0, 0], sizes = [8, 32], strides = [1, 1]} : vector<8x96xf32> to vector<8x32xf32>
    %85 = arith.addf %83, %84 : vector<8x32xf32>
    %86 = arith.negf %85 : vector<8x32xf32>
    %87 = math.exp %86 : vector<8x32xf32>
    %cst_25 = arith.constant 1.000000e+00 : f32
    %88 = vector.broadcast %cst_25 : f32 to vector<8x32xf32>
    %89 = arith.addf %88, %87 : vector<8x32xf32>
    %90 = arith.divf %88, %89 : vector<8x32xf32>
    %91 = vector.extract_strided_slice %79 {offsets = [0, 32], sizes = [8, 32], strides = [1, 1]} : vector<8x96xf32> to vector<8x32xf32>
    %92 = vector.extract_strided_slice %82 {offsets = [0, 32], sizes = [8, 32], strides = [1, 1]} : vector<8x96xf32> to vector<8x32xf32>
    %93 = arith.addf %91, %92 : vector<8x32xf32>
    %94 = arith.negf %93 : vector<8x32xf32>
    %95 = math.exp %94 : vector<8x32xf32>
    %cst_26 = arith.constant 1.000000e+00 : f32
    %96 = vector.broadcast %cst_26 : f32 to vector<8x32xf32>
    %97 = arith.addf %96, %95 : vector<8x32xf32>
    %98 = arith.divf %96, %97 : vector<8x32xf32>
    %99 = vector.extract_strided_slice %79 {offsets = [0, 64], sizes = [8, 32], strides = [1, 1]} : vector<8x96xf32> to vector<8x32xf32>
    %100 = vector.extract_strided_slice %82 {offsets = [0, 64], sizes = [8, 32], strides = [1, 1]} : vector<8x96xf32> to vector<8x32xf32>
    %101 = arith.mulf %90, %100 : vector<8x32xf32>
    %102 = arith.addf %99, %101 : vector<8x32xf32>
    %103 = math.tanh %102 : vector<8x32xf32>
    %104 = arith.subf %73, %103 : vector<8x32xf32>
    %105 = arith.mulf %98, %104 : vector<8x32xf32>
    %106 = arith.addf %103, %105 : vector<8x32xf32>
    %107 = arith.index_cast %77 : i32 to index
    %c0_27 = arith.constant 0 : index
    %108 = vector.load %arg9[%107, %c0_27] : memref<64x32xf32, #tpu.memory_space<vmem>>, vector<8x32xf32>
    tpu.vector_store %arg9[%107, %c0_27], %106 {strides = array<i32>} : memref<64x32xf32, #tpu.memory_space<vmem>>, vector<8x32xf32>,
    %c3_i32 = arith.constant 3 : i32
    %c8_i32_28 = arith.constant 8 : i32
    %109 = arith.muli %c3_i32, %c8_i32_28 : i32
    %110 = tpu.assume_multiple %109, 8 : i32
    %111 = arith.index_cast %110 : i32 to index
    %c0_29 = arith.constant 0 : index
    %112 = vector.load %arg8[%111, %c0_29] : memref<64x96xf32, #tpu.memory_space<vmem>>, vector<8x96xf32>
    %cst_30 = arith.constant dense<0.000000e+00> : vector<8x96xf32>
    %113 = tpu.matmul %106, %7, %cst_30 {dimension_numbers = #tpu.dot_dimension_numbers<[1], [0], [0], [1], [0, 0, 1, 1], [], []>} : vector<8x32xf32>, vector<32x96xf32>, vector<8x96xf32> -> vector<8x96xf32>
    %114 = vector.broadcast %8 : vector<1x96xf32> to vector<8x96xf32>
    %115 = arith.addf %113, %114 : vector<8x96xf32>
    %116 = vector.extract_strided_slice %112 {offsets = [0, 0], sizes = [8, 32], strides = [1, 1]} : vector<8x96xf32> to vector<8x32xf32>
    %117 = vector.extract_strided_slice %115 {offsets = [0, 0], sizes = [8, 32], strides = [1, 1]} : vector<8x96xf32> to vector<8x32xf32>
    %118 = arith.addf %116, %117 : vector<8x32xf32>
    %119 = arith.negf %118 : vector<8x32xf32>
    %120 = math.exp %119 : vector<8x32xf32>
    %cst_31 = arith.constant 1.000000e+00 : f32
    %121 = vector.broadcast %cst_31 : f32 to vector<8x32xf32>
    %122 = arith.addf %121, %120 : vector<8x32xf32>
    %123 = arith.divf %121, %122 : vector<8x32xf32>
    %124 = vector.extract_strided_slice %112 {offsets = [0, 32], sizes = [8, 32], strides = [1, 1]} : vector<8x96xf32> to vector<8x32xf32>
    %125 = vector.extract_strided_slice %115 {offsets = [0, 32], sizes = [8, 32], strides = [1, 1]} : vector<8x96xf32> to vector<8x32xf32>
    %126 = arith.addf %124, %125 : vector<8x32xf32>
    %127 = arith.negf %126 : vector<8x32xf32>
    %128 = math.exp %127 : vector<8x32xf32>
    %cst_32 = arith.constant 1.000000e+00 : f32
    %129 = vector.broadcast %cst_32 : f32 to vector<8x32xf32>
    %130 = arith.addf %129, %128 : vector<8x32xf32>
    %131 = arith.divf %129, %130 : vector<8x32xf32>
    %132 = vector.extract_strided_slice %112 {offsets = [0, 64], sizes = [8, 32], strides = [1, 1]} : vector<8x96xf32> to vector<8x32xf32>
    %133 = vector.extract_strided_slice %115 {offsets = [0, 64], sizes = [8, 32], strides = [1, 1]} : vector<8x96xf32> to vector<8x32xf32>
    %134 = arith.mulf %123, %133 : vector<8x32xf32>
    %135 = arith.addf %132, %134 : vector<8x32xf32>
    %136 = math.tanh %135 : vector<8x32xf32>
    %137 = arith.subf %106, %136 : vector<8x32xf32>
    %138 = arith.mulf %131, %137 : vector<8x32xf32>
    %139 = arith.addf %136, %138 : vector<8x32xf32>
    %140 = arith.index_cast %110 : i32 to index
    %c0_33 = arith.constant 0 : index
    %141 = vector.load %arg9[%140, %c0_33] : memref<64x32xf32, #tpu.memory_space<vmem>>, vector<8x32xf32>
    tpu.vector_store %arg9[%140, %c0_33], %139 {strides = array<i32>} : memref<64x32xf32, #tpu.memory_space<vmem>>, vector<8x32xf32>,
    %c4_i32 = arith.constant 4 : i32
    %c8_i32_34 = arith.constant 8 : i32
    %142 = arith.muli %c4_i32, %c8_i32_34 : i32
    %143 = tpu.assume_multiple %142, 8 : i32
    %144 = arith.index_cast %143 : i32 to index
    %c0_35 = arith.constant 0 : index
    %145 = vector.load %arg8[%144, %c0_35] : memref<64x96xf32, #tpu.memory_space<vmem>>, vector<8x96xf32>
    %cst_36 = arith.constant dense<0.000000e+00> : vector<8x96xf32>
    %146 = tpu.matmul %139, %7, %cst_36 {dimension_numbers = #tpu.dot_dimension_numbers<[1], [0], [0], [1], [0, 0, 1, 1], [], []>} : vector<8x32xf32>, vector<32x96xf32>, vector<8x96xf32> -> vector<8x96xf32>
    %147 = vector.broadcast %8 : vector<1x96xf32> to vector<8x96xf32>
    %148 = arith.addf %146, %147 : vector<8x96xf32>
    %149 = vector.extract_strided_slice %145 {offsets = [0, 0], sizes = [8, 32], strides = [1, 1]} : vector<8x96xf32> to vector<8x32xf32>
    %150 = vector.extract_strided_slice %148 {offsets = [0, 0], sizes = [8, 32], strides = [1, 1]} : vector<8x96xf32> to vector<8x32xf32>
    %151 = arith.addf %149, %150 : vector<8x32xf32>
    %152 = arith.negf %151 : vector<8x32xf32>
    %153 = math.exp %152 : vector<8x32xf32>
    %cst_37 = arith.constant 1.000000e+00 : f32
    %154 = vector.broadcast %cst_37 : f32 to vector<8x32xf32>
    %155 = arith.addf %154, %153 : vector<8x32xf32>
    %156 = arith.divf %154, %155 : vector<8x32xf32>
    %157 = vector.extract_strided_slice %145 {offsets = [0, 32], sizes = [8, 32], strides = [1, 1]} : vector<8x96xf32> to vector<8x32xf32>
    %158 = vector.extract_strided_slice %148 {offsets = [0, 32], sizes = [8, 32], strides = [1, 1]} : vector<8x96xf32> to vector<8x32xf32>
    %159 = arith.addf %157, %158 : vector<8x32xf32>
    %160 = arith.negf %159 : vector<8x32xf32>
    %161 = math.exp %160 : vector<8x32xf32>
    %cst_38 = arith.constant 1.000000e+00 : f32
    %162 = vector.broadcast %cst_38 : f32 to vector<8x32xf32>
    %163 = arith.addf %162, %161 : vector<8x32xf32>
    %164 = arith.divf %162, %163 : vector<8x32xf32>
    %165 = vector.extract_strided_slice %145 {offsets = [0, 64], sizes = [8, 32], strides = [1, 1]} : vector<8x96xf32> to vector<8x32xf32>
    %166 = vector.extract_strided_slice %148 {offsets = [0, 64], sizes = [8, 32], strides = [1, 1]} : vector<8x96xf32> to vector<8x32xf32>
    %167 = arith.mulf %156, %166 : vector<8x32xf32>
    %168 = arith.addf %165, %167 : vector<8x32xf32>
    %169 = math.tanh %168 : vector<8x32xf32>
    %170 = arith.subf %139, %169 : vector<8x32xf32>
    %171 = arith.mulf %164, %170 : vector<8x32xf32>
    %172 = arith.addf %169, %171 : vector<8x32xf32>
    %173 = arith.index_cast %143 : i32 to index
    %c0_39 = arith.constant 0 : index
    %174 = vector.load %arg9[%173, %c0_39] : memref<64x32xf32, #tpu.memory_space<vmem>>, vector<8x32xf32>
    tpu.vector_store %arg9[%173, %c0_39], %172 {strides = array<i32>} : memref<64x32xf32, #tpu.memory_space<vmem>>, vector<8x32xf32>,
    %c5_i32 = arith.constant 5 : i32
    %c8_i32_40 = arith.constant 8 : i32
    %175 = arith.muli %c5_i32, %c8_i32_40 : i32
    %176 = tpu.assume_multiple %175, 8 : i32
    %177 = arith.index_cast %176 : i32 to index
    %c0_41 = arith.constant 0 : index
    %178 = vector.load %arg8[%177, %c0_41] : memref<64x96xf32, #tpu.memory_space<vmem>>, vector<8x96xf32>
    %cst_42 = arith.constant dense<0.000000e+00> : vector<8x96xf32>
    %179 = tpu.matmul %172, %7, %cst_42 {dimension_numbers = #tpu.dot_dimension_numbers<[1], [0], [0], [1], [0, 0, 1, 1], [], []>} : vector<8x32xf32>, vector<32x96xf32>, vector<8x96xf32> -> vector<8x96xf32>
    %180 = vector.broadcast %8 : vector<1x96xf32> to vector<8x96xf32>
    %181 = arith.addf %179, %180 : vector<8x96xf32>
    %182 = vector.extract_strided_slice %178 {offsets = [0, 0], sizes = [8, 32], strides = [1, 1]} : vector<8x96xf32> to vector<8x32xf32>
    %183 = vector.extract_strided_slice %181 {offsets = [0, 0], sizes = [8, 32], strides = [1, 1]} : vector<8x96xf32> to vector<8x32xf32>
    %184 = arith.addf %182, %183 : vector<8x32xf32>
    %185 = arith.negf %184 : vector<8x32xf32>
    %186 = math.exp %185 : vector<8x32xf32>
    %cst_43 = arith.constant 1.000000e+00 : f32
    %187 = vector.broadcast %cst_43 : f32 to vector<8x32xf32>
    %188 = arith.addf %187, %186 : vector<8x32xf32>
    %189 = arith.divf %187, %188 : vector<8x32xf32>
    %190 = vector.extract_strided_slice %178 {offsets = [0, 32], sizes = [8, 32], strides = [1, 1]} : vector<8x96xf32> to vector<8x32xf32>
    %191 = vector.extract_strided_slice %181 {offsets = [0, 32], sizes = [8, 32], strides = [1, 1]} : vector<8x96xf32> to vector<8x32xf32>
    %192 = arith.addf %190, %191 : vector<8x32xf32>
    %193 = arith.negf %192 : vector<8x32xf32>
    %194 = math.exp %193 : vector<8x32xf32>
    %cst_44 = arith.constant 1.000000e+00 : f32
    %195 = vector.broadcast %cst_44 : f32 to vector<8x32xf32>
    %196 = arith.addf %195, %194 : vector<8x32xf32>
    %197 = arith.divf %195, %196 : vector<8x32xf32>
    %198 = vector.extract_strided_slice %178 {offsets = [0, 64], sizes = [8, 32], strides = [1, 1]} : vector<8x96xf32> to vector<8x32xf32>
    %199 = vector.extract_strided_slice %181 {offsets = [0, 64], sizes = [8, 32], strides = [1, 1]} : vector<8x96xf32> to vector<8x32xf32>
    %200 = arith.mulf %189, %199 : vector<8x32xf32>
    %201 = arith.addf %198, %200 : vector<8x32xf32>
    %202 = math.tanh %201 : vector<8x32xf32>
    %203 = arith.subf %172, %202 : vector<8x32xf32>
    %204 = arith.mulf %197, %203 : vector<8x32xf32>
    %205 = arith.addf %202, %204 : vector<8x32xf32>
    %206 = arith.index_cast %176 : i32 to index
    %c0_45 = arith.constant 0 : index
    %207 = vector.load %arg9[%206, %c0_45] : memref<64x32xf32, #tpu.memory_space<vmem>>, vector<8x32xf32>
    tpu.vector_store %arg9[%206, %c0_45], %205 {strides = array<i32>} : memref<64x32xf32, #tpu.memory_space<vmem>>, vector<8x32xf32>,
    %c6_i32 = arith.constant 6 : i32
    %c8_i32_46 = arith.constant 8 : i32
    %208 = arith.muli %c6_i32, %c8_i32_46 : i32
    %209 = tpu.assume_multiple %208, 8 : i32
    %210 = arith.index_cast %209 : i32 to index
    %c0_47 = arith.constant 0 : index
    %211 = vector.load %arg8[%210, %c0_47] : memref<64x96xf32, #tpu.memory_space<vmem>>, vector<8x96xf32>
    %cst_48 = arith.constant dense<0.000000e+00> : vector<8x96xf32>
    %212 = tpu.matmul %205, %7, %cst_48 {dimension_numbers = #tpu.dot_dimension_numbers<[1], [0], [0], [1], [0, 0, 1, 1], [], []>} : vector<8x32xf32>, vector<32x96xf32>, vector<8x96xf32> -> vector<8x96xf32>
    %213 = vector.broadcast %8 : vector<1x96xf32> to vector<8x96xf32>
    %214 = arith.addf %212, %213 : vector<8x96xf32>
    %215 = vector.extract_strided_slice %211 {offsets = [0, 0], sizes = [8, 32], strides = [1, 1]} : vector<8x96xf32> to vector<8x32xf32>
    %216 = vector.extract_strided_slice %214 {offsets = [0, 0], sizes = [8, 32], strides = [1, 1]} : vector<8x96xf32> to vector<8x32xf32>
    %217 = arith.addf %215, %216 : vector<8x32xf32>
    %218 = arith.negf %217 : vector<8x32xf32>
    %219 = math.exp %218 : vector<8x32xf32>
    %cst_49 = arith.constant 1.000000e+00 : f32
    %220 = vector.broadcast %cst_49 : f32 to vector<8x32xf32>
    %221 = arith.addf %220, %219 : vector<8x32xf32>
    %222 = arith.divf %220, %221 : vector<8x32xf32>
    %223 = vector.extract_strided_slice %211 {offsets = [0, 32], sizes = [8, 32], strides = [1, 1]} : vector<8x96xf32> to vector<8x32xf32>
    %224 = vector.extract_strided_slice %214 {offsets = [0, 32], sizes = [8, 32], strides = [1, 1]} : vector<8x96xf32> to vector<8x32xf32>
    %225 = arith.addf %223, %224 : vector<8x32xf32>
    %226 = arith.negf %225 : vector<8x32xf32>
    %227 = math.exp %226 : vector<8x32xf32>
    %cst_50 = arith.constant 1.000000e+00 : f32
    %228 = vector.broadcast %cst_50 : f32 to vector<8x32xf32>
    %229 = arith.addf %228, %227 : vector<8x32xf32>
    %230 = arith.divf %228, %229 : vector<8x32xf32>
    %231 = vector.extract_strided_slice %211 {offsets = [0, 64], sizes = [8, 32], strides = [1, 1]} : vector<8x96xf32> to vector<8x32xf32>
    %232 = vector.extract_strided_slice %214 {offsets = [0, 64], sizes = [8, 32], strides = [1, 1]} : vector<8x96xf32> to vector<8x32xf32>
    %233 = arith.mulf %222, %232 : vector<8x32xf32>
    %234 = arith.addf %231, %233 : vector<8x32xf32>
    %235 = math.tanh %234 : vector<8x32xf32>
    %236 = arith.subf %205, %235 : vector<8x32xf32>
    %237 = arith.mulf %230, %236 : vector<8x32xf32>
    %238 = arith.addf %235, %237 : vector<8x32xf32>
    %239 = arith.index_cast %209 : i32 to index
    %c0_51 = arith.constant 0 : index
    %240 = vector.load %arg9[%239, %c0_51] : memref<64x32xf32, #tpu.memory_space<vmem>>, vector<8x32xf32>
    tpu.vector_store %arg9[%239, %c0_51], %238 {strides = array<i32>} : memref<64x32xf32, #tpu.memory_space<vmem>>, vector<8x32xf32>,
    %c7_i32 = arith.constant 7 : i32
    %c8_i32_52 = arith.constant 8 : i32
    %241 = arith.muli %c7_i32, %c8_i32_52 : i32
    %242 = tpu.assume_multiple %241, 8 : i32
    %243 = arith.index_cast %242 : i32 to index
    %c0_53 = arith.constant 0 : index
    %244 = vector.load %arg8[%243, %c0_53] : memref<64x96xf32, #tpu.memory_space<vmem>>, vector<8x96xf32>
    %cst_54 = arith.constant dense<0.000000e+00> : vector<8x96xf32>
    %245 = tpu.matmul %238, %7, %cst_54 {dimension_numbers = #tpu.dot_dimension_numbers<[1], [0], [0], [1], [0, 0, 1, 1], [], []>} : vector<8x32xf32>, vector<32x96xf32>, vector<8x96xf32> -> vector<8x96xf32>
    %246 = vector.broadcast %8 : vector<1x96xf32> to vector<8x96xf32>
    %247 = arith.addf %245, %246 : vector<8x96xf32>
    %248 = vector.extract_strided_slice %244 {offsets = [0, 0], sizes = [8, 32], strides = [1, 1]} : vector<8x96xf32> to vector<8x32xf32>
    %249 = vector.extract_strided_slice %247 {offsets = [0, 0], sizes = [8, 32], strides = [1, 1]} : vector<8x96xf32> to vector<8x32xf32>
    %250 = arith.addf %248, %249 : vector<8x32xf32>
    %251 = arith.negf %250 : vector<8x32xf32>
    %252 = math.exp %251 : vector<8x32xf32>
    %cst_55 = arith.constant 1.000000e+00 : f32
    %253 = vector.broadcast %cst_55 : f32 to vector<8x32xf32>
    %254 = arith.addf %253, %252 : vector<8x32xf32>
    %255 = arith.divf %253, %254 : vector<8x32xf32>
    %256 = vector.extract_strided_slice %244 {offsets = [0, 32], sizes = [8, 32], strides = [1, 1]} : vector<8x96xf32> to vector<8x32xf32>
    %257 = vector.extract_strided_slice %247 {offsets = [0, 32], sizes = [8, 32], strides = [1, 1]} : vector<8x96xf32> to vector<8x32xf32>
    %258 = arith.addf %256, %257 : vector<8x32xf32>
    %259 = arith.negf %258 : vector<8x32xf32>
    %260 = math.exp %259 : vector<8x32xf32>
    %cst_56 = arith.constant 1.000000e+00 : f32
    %261 = vector.broadcast %cst_56 : f32 to vector<8x32xf32>
    %262 = arith.addf %261, %260 : vector<8x32xf32>
    %263 = arith.divf %261, %262 : vector<8x32xf32>
    %264 = vector.extract_strided_slice %244 {offsets = [0, 64], sizes = [8, 32], strides = [1, 1]} : vector<8x96xf32> to vector<8x32xf32>
    %265 = vector.extract_strided_slice %247 {offsets = [0, 64], sizes = [8, 32], strides = [1, 1]} : vector<8x96xf32> to vector<8x32xf32>
    %266 = arith.mulf %255, %265 : vector<8x32xf32>
    %267 = arith.addf %264, %266 : vector<8x32xf32>
    %268 = math.tanh %267 : vector<8x32xf32>
    %269 = arith.subf %238, %268 : vector<8x32xf32>
    %270 = arith.mulf %263, %269 : vector<8x32xf32>
    %271 = arith.addf %268, %270 : vector<8x32xf32>
    %272 = arith.index_cast %242 : i32 to index
    %c0_57 = arith.constant 0 : index
    %273 = vector.load %arg9[%272, %c0_57] : memref<64x32xf32, #tpu.memory_space<vmem>>, vector<8x32xf32>
    tpu.vector_store %arg9[%272, %c0_57], %271 {strides = array<i32>} : memref<64x32xf32, #tpu.memory_space<vmem>>, vector<8x32xf32>,
    %c8_i32_58 = arith.constant 8 : i32
    %c0_59 = arith.constant 0 : index
    %c0_60 = arith.constant 0 : index
    %274 = vector.load %arg9[%c0_59, %c0_60] : memref<64x32xf32, #tpu.memory_space<vmem>>, vector<64x32xf32>
    %cst_61 = arith.constant dense<0.000000e+00> : vector<64xf32>
    %275 = vector.multi_reduction <add>, %274, %cst_61 [1] : vector<64x32xf32> to vector<64xf32>
    %276 = vector.shape_cast %275 : vector<64xf32> to vector<64x1xf32>
    %cst_62 = arith.constant 3.200000e+01 : f32
    %277 = vector.broadcast %cst_62 : f32 to vector<64x1xf32>
    %278 = arith.divf %276, %277 : vector<64x1xf32>
    %279 = vector.broadcast %278 : vector<64x1xf32> to vector<64x32xf32>
    %280 = arith.subf %274, %279 : vector<64x32xf32>
    %281 = arith.mulf %280, %280 : vector<64x32xf32>
    %cst_63 = arith.constant dense<0.000000e+00> : vector<64xf32>
    %282 = vector.multi_reduction <add>, %281, %cst_63 [1] : vector<64x32xf32> to vector<64xf32>
    %283 = vector.shape_cast %282 : vector<64xf32> to vector<64x1xf32>
    %cst_64 = arith.constant 3.200000e+01 : f32
    %284 = vector.broadcast %cst_64 : f32 to vector<64x1xf32>
    %285 = arith.divf %283, %284 : vector<64x1xf32>
    %286 = vector.broadcast %278 : vector<64x1xf32> to vector<64x32xf32>
    %287 = arith.subf %274, %286 : vector<64x32xf32>
    %cst_65 = arith.constant 9.99999974E-6 : f32
    %288 = vector.broadcast %cst_65 : f32 to vector<64x1xf32>
    %289 = arith.addf %285, %288 : vector<64x1xf32>
    %290 = math.rsqrt %289 : vector<64x1xf32>
    %291 = vector.broadcast %290 : vector<64x1xf32> to vector<64x32xf32>
    %292 = arith.mulf %287, %291 : vector<64x32xf32>
    %c0_66 = arith.constant 0 : index
    %c0_67 = arith.constant 0 : index
    %293 = vector.load %arg4[%c0_66, %c0_67] : memref<2x32xf32, #tpu.memory_space<vmem>>, vector<1x32xf32>
    %294 = vector.broadcast %293 : vector<1x32xf32> to vector<64x32xf32>
    %295 = arith.mulf %292, %294 : vector<64x32xf32>
    %c1_68 = arith.constant 1 : index
    %c0_69 = arith.constant 0 : index
    %296 = vector.load %arg4[%c1_68, %c0_69] : memref<2x32xf32, #tpu.memory_space<vmem>>, vector<1x32xf32>
    %297 = vector.broadcast %296 : vector<1x32xf32> to vector<64x32xf32>
    %298 = arith.addf %295, %297 : vector<64x32xf32>
    %c0_70 = arith.constant 0 : index
    %c0_71 = arith.constant 0 : index
    %299 = vector.load %arg5[%c0_70, %c0_71] : memref<32x8xf32, #tpu.memory_space<vmem>>, vector<32x8xf32>
    %cst_72 = arith.constant dense<0.000000e+00> : vector<64x8xf32>
    %300 = tpu.matmul %298, %299, %cst_72 {dimension_numbers = #tpu.dot_dimension_numbers<[1], [0], [0], [1], [0, 0, 1, 1], [], []>} : vector<64x32xf32>, vector<32x8xf32>, vector<64x8xf32> -> vector<64x8xf32>
    %c0_73 = arith.constant 0 : index
    %c0_74 = arith.constant 0 : index
    %301 = vector.load %arg6[%c0_73, %c0_74] : memref<1x8xf32, #tpu.memory_space<vmem>>, vector<1x8xf32>
    %302 = vector.broadcast %301 : vector<1x8xf32> to vector<64x8xf32>
    %303 = arith.addf %300, %302 : vector<64x8xf32>
    %304 = arith.negf %303 : vector<64x8xf32>
    %305 = math.exp %304 : vector<64x8xf32>
    %cst_75 = arith.constant 1.000000e+00 : f32
    %306 = vector.broadcast %cst_75 : f32 to vector<64x8xf32>
    %307 = arith.addf %306, %305 : vector<64x8xf32>
    %308 = arith.divf %306, %307 : vector<64x8xf32>
    %c0_76 = arith.constant 0 : index
    %c0_77 = arith.constant 0 : index
    %309 = vector.load %arg7[%c0_76, %c0_77] : memref<64x8xf32, #tpu.memory_space<vmem>>, vector<64x8xf32>
    tpu.vector_store %arg7[%c0_76, %c0_77], %308 {strides = array<i32>} : memref<64x8xf32, #tpu.memory_space<vmem>>, vector<64x8xf32>,
    return
  }
}

</mosaic_0001>

<llo_original>
// kernel: tpu_custom_call.1
$region0: #{tpu_custom_call.1}
  #allocation0 [shape = 'u32[]', space=smem, size = 0x4, offset = 0x4, fixed_abs, tag = 'smem constant byte address 0x4 - core index']
  #allocation1 [shape = 'u32[144,128]{1,0:T(1,128)}', space=vmem, size = 0x12000, scoped, tag = 'internal scratch']
  #allocation2 [shape = 'f32[64,96]{1,0:T(8,128)}', space=vmem, size = 0x8000, scoped, tag = 'scratch operand']
  #allocation3 [shape = 'f32[64,32]{1,0:T(8,128)}', space=vmem, size = 0x8000, scoped, tag = 'scratch operand']
  %s0 = inlined_call_operand.vmem [shape: f32[64,16], index: 0, kind: input, shape index: {}]
  %s1 = inlined_call_operand.vmem [shape: f32[16,96], index: 1, kind: input, shape index: {}]
  %s2 = inlined_call_operand.vmem [shape: f32[32,96], index: 2, kind: input, shape index: {}]
  %s3 = inlined_call_operand.vmem [shape: f32[2,96], index: 3, kind: input, shape index: {}]
  %s4 = inlined_call_operand.vmem [shape: f32[2,32], index: 4, kind: input, shape index: {}]
  %s5 = inlined_call_operand.vmem [shape: f32[32,8], index: 5, kind: input, shape index: {}]
  %s6 = inlined_call_operand.vmem [shape: f32[1,8], index: 6, kind: input, shape index: {}]
  %s7 = inlined_call_operand.vmem [shape: f32[64,8], index: 7, kind: output, shape index: {}]
  %s8 = sld [smem:[#allocation0]]
  $region38: #{tpu_custom_call.1} parent=0
    _
  %s10 = ssub.s32 1, %s8
  %s11 = scalar_select 0, %s10, %s8
  // Predicated region
  $region2: #{tpu_custom_call.1} parent=0 // pred_check
    _
  $region3: #{tpu_custom_call.1} parent=0 // pred_check_branch
    %13 = sbr.rel (0) target = $region5
  $region4: #{tpu_custom_call.1} parent=0 // pred_region
    _
  $region5: #{tpu_custom_call.1} parent=0 // pred_fallthru
    _
  // Predicated region
  $region6: #{tpu_custom_call.1} parent=0 // pred_check
    _
  $region7: #{tpu_custom_call.1} parent=0 // pred_check_branch
    %15 = sbr.rel (0) target = $region9
  $region8: #{tpu_custom_call.1} parent=0 // pred_region
    _
  $region9: #{tpu_custom_call.1} parent=0 // pred_fallthru
    _
  // Predicated region
  $region10: #{tpu_custom_call.1} parent=0 // pred_check
    _
  $region11: #{tpu_custom_call.1} parent=0 // pred_check_branch
    %17 = sbr.rel (0) target = $region13
  $region12: #{tpu_custom_call.1} parent=0 // pred_region
    _
  $region13: #{tpu_custom_call.1} parent=0 // pred_fallthru
    _
  // Predicated region
  $region14: #{tpu_custom_call.1} parent=0 // pred_check
    _
  $region15: #{tpu_custom_call.1} parent=0 // pred_check_branch
    %19 = sbr.rel (0) target = $region17
  $region16: #{tpu_custom_call.1} parent=0 // pred_region
    _
  $region17: #{tpu_custom_call.1} parent=0 // pred_fallthru
    _
  // Predicated region
  $region18: #{tpu_custom_call.1} parent=0 // pred_check
    _
  $region19: #{tpu_custom_call.1} parent=0 // pred_check_branch
    %21 = sbr.rel (0) target = $region21
  $region20: #{tpu_custom_call.1} parent=0 // pred_region
    _
  $region21: #{tpu_custom_call.1} parent=0 // pred_fallthru
    _
  // Predicated region
  $region22: #{tpu_custom_call.1} parent=0 // pred_check
    _
  $region23: #{tpu_custom_call.1} parent=0 // pred_check_branch
    %23 = sbr.rel (0) target = $region25
  $region24: #{tpu_custom_call.1} parent=0 // pred_region
    _
  $region25: #{tpu_custom_call.1} parent=0 // pred_fallthru
    _
  // Predicated region
  $region26: #{tpu_custom_call.1} parent=0 // pred_check
    _
  $region27: #{tpu_custom_call.1} parent=0 // pred_check_branch
    %25 = sbr.rel (0) target = $region29
  $region28: #{tpu_custom_call.1} parent=0 // pred_region
    _
  $region29: #{tpu_custom_call.1} parent=0 // pred_fallthru
    _
  %v26 = vld [vmem:[%s0] sm:$0xff]
  %v27 = vld [vmem:[%s0 + $0x8] sm:$0xff]
  %v28 = vld [vmem:[%s0 + $0x10] sm:$0xff]
  %v29 = vld [vmem:[%s0 + $0x18] sm:$0xff]
  %v30 = vld [vmem:[%s0 + $0x20] sm:$0xff]
  %v31 = vld [vmem:[%s0 + $0x28] sm:$0xff]
  %v32 = vld [vmem:[%s0 + $0x30] sm:$0xff]
  %v33 = vld [vmem:[%s0 + $0x38] sm:$0xff]
  %v34 = vld [vmem:[%s1] sm:$0xff]
  %v35 = vld [vmem:[%s1 + $0x8] sm:$0xff]
  %v36 = vld [vmem:[%s3] sm:$0x1]
  %v37 = vlaneseq
  %v38 = vshrl.u32 %v37, 7
  %v39 = vsub.s32 0, %v38
  %v40 = vrot.slane %v36, %v39
  %vm41 = vcmask 130048
  %v43 = vsel %vm41, %v26, 0
  %v46 = vsel %vm41, %v27, 0
  %v49 = vsel %vm41, %v28, 0
  %v52 = vsel %vm41, %v29, 0
  %v55 = vsel %vm41, %v30, 0
  %v58 = vsel %vm41, %v31, 0
  %v61 = vsel %vm41, %v32, 0
  %v64 = vsel %vm41, %v33, 0
  %66 = vmatprep.subr.mxu0 0.0
  %67 = vmatpush1.msra.mxu0 %v34
  %68 = vmatprep.subr.mxu0 0.0
  %69 = vmatpush1.msra.mxu0 %v35
  %70 = vmatprep.subr.mxu0 0.0
  %71 = vmatpush1.msra.mxu0 0.0
  %72 = vmatprep.subr.mxu0 0.0
  %73 = vmatpush1.msra.mxu0 0.0
  %74 = vmatprep.subr.mxu0 0.0
  %75 = vmatpush1.msra.mxu0 0.0
  %76 = vmatprep.subr.mxu0 0.0
  %77 = vmatpush1.msra.mxu0 0.0
  %78 = vmatprep.subr.mxu0 0.0
  %79 = vmatpush1.msra.mxu0 0.0
  %80 = vmatprep.subr.mxu0 0.0
  %81 = vmatpush1.msra.mxu0 0.0
  %82 = vmatprep.subr.mxu0 0.0
  %83 = vmatpush1.msra.mxu0 0.0
  %84 = vmatprep.subr.mxu0 0.0
  %85 = vmatpush1.msra.mxu0 0.0
  %86 = vmatprep.subr.mxu0 0.0
  %87 = vmatpush1.msra.mxu0 0.0
  %88 = vmatprep.subr.mxu0 0.0
  %89 = vmatpush1.msra.mxu0 0.0
  %90 = vmatprep.subr.mxu0 0.0
  %91 = vmatpush1.msra.mxu0 0.0
  %92 = vmatprep.subr.mxu0 0.0
  %93 = vmatpush1.msra.mxu0 0.0
  %94 = vmatprep.subr.mxu0 0.0
  %95 = vmatpush1.msra.mxu0 0.0
  %96 = vmatprep.subr.mxu0 0.0
  %97 = vmatpush1.msra.mxu0 0.0
  %98 = vmatprep.subr.mxu0 0.0
  %99 = vmatpush1.msra.mxu0 0.0
  %100 = vmatprep.subr.mxu0 0.0
  %101 = vmatpush1.msra.mxu0 0.0
  %102 = vmatprep.subr.mxu0 0.0
  %103 = vmatpush1.msra.mxu0 0.0
  %104 = vmatprep.subr.mxu0 0.0
  %105 = vmatpush1.msra.mxu0 0.0
  %106 = vmatprep.subr.mxu0 0.0
  %107 = vmatpush1.msra.mxu0 0.0
  %108 = vmatprep.subr.mxu0 0.0
  %109 = vmatpush1.msra.mxu0 0.0
  %110 = vmatprep.subr.mxu0 0.0
  %111 = vmatpush1.msra.mxu0 0.0
  %112 = vmatprep.subr.mxu0 0.0
  %113 = vmatpush1.msra.mxu0 0.0
  %114 = vmatprep.subr.mxu0 0.0
  %115 = vmatpush1.msra.mxu0 0.0
  %116 = vmatprep.subr.mxu0 0.0
  %117 = vmatpush1.msra.mxu0 0.0
  %118 = vmatprep.subr.mxu0 0.0
  %119 = vmatpush1.msra.mxu0 0.0
  %120 = vmatprep.subr.mxu0 0.0
  %121 = vmatpush1.msra.mxu0 0.0
  %122 = vmatprep.subr.mxu0 0.0
  %123 = vmatpush1.msra.mxu0 0.0
  %124 = vmatprep.subr.mxu0 0.0
  %125 = vmatpush1.msra.mxu0 0.0
  %126 = vmatprep.subr.mxu0 0.0
  %127 = vmatpush1.msra.mxu0 0.0
  %128 = vmatprep.subr.mxu0 0.0
  %129 = vmatpush1.msra.mxu0 0.0
  %130 = vmatprep.mubr.f32.mxu0 0.0
  %131 = vmatmul.mubr.f32.gmra.mrb[0].mxu0 %v43
  %v132 = vpop.f32.mrb[0].mxu0
  %v133 = vadd.f32 %v40, %v132
  %v134 = vpop.f32.mrb[0].mxu0
  %135 = vmatprep.mubr.f32.mxu0 0.0
  %136 = vmatmul.mubr.f32.gmra.mrb[0].mxu0 %v46
  %v137 = vpop.f32.mrb[0].mxu0
  %v138 = vadd.f32 %v40, %v137
  %v139 = vpop.f32.mrb[0].mxu0
  %140 = vmatprep.mubr.f32.mxu0 0.0
  %141 = vmatmul.mubr.f32.gmra.mrb[0].mxu0 %v49
  %v142 = vpop.f32.mrb[0].mxu0
  %v143 = vadd.f32 %v40, %v142
  %v144 = vpop.f32.mrb[0].mxu0
  %145 = vmatprep.mubr.f32.mxu0 0.0
  %146 = vmatmul.mubr.f32.gmra.mrb[0].mxu0 %v52
  %v147 = vpop.f32.mrb[0].mxu0
  %v148 = vadd.f32 %v40, %v147
  %v149 = vpop.f32.mrb[0].mxu0
  %150 = vmatprep.mubr.f32.mxu0 0.0
  %151 = vmatmul.mubr.f32.gmra.mrb[0].mxu0 %v55
  %v152 = vpop.f32.mrb[0].mxu0
  %v153 = vadd.f32 %v40, %v152
  %v154 = vpop.f32.mrb[0].mxu0
  %155 = vmatprep.mubr.f32.mxu0 0.0
  %156 = vmatmul.mubr.f32.gmra.mrb[0].mxu0 %v58
  %v157 = vpop.f32.mrb[0].mxu0
  %v158 = vadd.f32 %v40, %v157
  %v159 = vpop.f32.mrb[0].mxu0
  %160 = vmatprep.mubr.f32.mxu0 0.0
  %161 = vmatmul.mubr.f32.gmra.mrb[0].mxu0 %v61
  %v162 = vpop.f32.mrb[0].mxu0
  %v163 = vadd.f32 %v40, %v162
  %v164 = vpop.f32.mrb[0].mxu0
  %165 = vmatprep.mubr.f32.mxu0 0.0
  %166 = vmatmul.mubr.f32.gmra.mrb[0].mxu0 %v64
  %v167 = vpop.f32.mrb[0].mxu0
  %v168 = vadd.f32 %v40, %v167
  %v169 = vpop.f32.mrb[0].mxu0
  %170 = vdwg.mxu0
  %vm171 = vcmask 785408
  %172 = vst.msk [vmem:[#allocation2] sm:$0xff] %vm171, %v133
  %173 = vst.msk [vmem:[#allocation2 + $0x8] sm:$0xff] %vm171, %v138
  %174 = vst.msk [vmem:[#allocation2 + $0x10] sm:$0xff] %vm171, %v143
  %175 = vst.msk [vmem:[#allocation2 + $0x18] sm:$0xff] %vm171, %v148
  %176 = vst.msk [vmem:[#allocation2 + $0x20] sm:$0xff] %vm171, %v153
  %177 = vst.msk [vmem:[#allocation2 + $0x28] sm:$0xff] %vm171, %v158
  %178 = vst.msk [vmem:[#allocation2 + $0x30] sm:$0xff] %vm171, %v163
  %179 = vst.msk [vmem:[#allocation2 + $0x38] sm:$0xff] %vm171, %v168
  %v180 = vld [vmem:[%s2] sm:$0xff]
  %v181 = vld [vmem:[%s2 + $0x8] sm:$0xff]
  %v182 = vld [vmem:[%s2 + $0x10] sm:$0xff]
  %v183 = vld [vmem:[%s2 + $0x18] sm:$0xff]
  %v184 = vld [vmem:[%s3 + $0x1] sm:$0x1]
  %v185 = vld [vmem:[#allocation2] sm:$0xff]
  %v186 = vlaneseq
  %v187 = vshrl.u32 %v186, 7
  %v188 = vsub.s32 0, %v187
  %v189 = vrot.slane %v184, %v188
  %vm190 = vcmask 261120
  %v192 = vsel %vm190, 0.0, 0
  %194 = vmatprep.subr.mxu0 0.0
  %195 = vmatpush1.msra.mxu0 %v180
  %196 = vmatprep.subr.mxu0 0.0
  %197 = vmatpush1.msra.mxu0 %v181
  %198 = vmatprep.subr.mxu0 0.0
  %199 = vmatpush1.msra.mxu0 %v182
  %200 = vmatprep.subr.mxu0 0.0
  %201 = vmatpush1.msra.mxu0 %v183
  %202 = vmatprep.subr.mxu0 0.0
  %203 = vmatpush1.msra.mxu0 0.0
  %204 = vmatprep.subr.mxu0 0.0
  %205 = vmatpush1.msra.mxu0 0.0
  %206 = vmatprep.subr.mxu0 0.0
  %207 = vmatpush1.msra.mxu0 0.0
  %208 = vmatprep.subr.mxu0 0.0
  %209 = vmatpush1.msra.mxu0 0.0
  %210 = vmatprep.subr.mxu0 0.0
  %211 = vmatpush1.msra.mxu0 0.0
  %212 = vmatprep.subr.mxu0 0.0
  %213 = vmatpush1.msra.mxu0 0.0
  %214 = vmatprep.subr.mxu0 0.0
  %215 = vmatpush1.msra.mxu0 0.0
  %216 = vmatprep.subr.mxu0 0.0
  %217 = vmatpush1.msra.mxu0 0.0
  %218 = vmatprep.subr.mxu0 0.0
  %219 = vmatpush1.msra.mxu0 0.0
  %220 = vmatprep.subr.mxu0 0.0
  %221 = vmatpush1.msra.mxu0 0.0
  %222 = vmatprep.subr.mxu0 0.0
  %223 = vmatpush1.msra.mxu0 0.0
  %224 = vmatprep.subr.mxu0 0.0
  %225 = vmatpush1.msra.mxu0 0.0
  %226 = vmatprep.subr.mxu0 0.0
  %227 = vmatpush1.msra.mxu0 0.0
  %228 = vmatprep.subr.mxu0 0.0
  %229 = vmatpush1.msra.mxu0 0.0
  %230 = vmatprep.subr.mxu0 0.0
  %231 = vmatpush1.msra.mxu0 0.0
  %232 = vmatprep.subr.mxu0 0.0
  %233 = vmatpush1.msra.mxu0 0.0
  %234 = vmatprep.subr.mxu0 0.0
  %235 = vmatpush1.msra.mxu0 0.0
  %236 = vmatprep.subr.mxu0 0.0
  %237 = vmatpush1.msra.mxu0 0.0
  %238 = vmatprep.subr.mxu0 0.0
  %239 = vmatpush1.msra.mxu0 0.0
  %240 = vmatprep.subr.mxu0 0.0
  %241 = vmatpush1.msra.mxu0 0.0
  %242 = vmatprep.subr.mxu0 0.0
  %243 = vmatpush1.msra.mxu0 0.0
  %244 = vmatprep.subr.mxu0 0.0
  %245 = vmatpush1.msra.mxu0 0.0
  %246 = vmatprep.subr.mxu0 0.0
  %247 = vmatpush1.msra.mxu0 0.0
  %248 = vmatprep.subr.mxu0 0.0
  %249 = vmatpush1.msra.mxu0 0.0
  %250 = vmatprep.subr.mxu0 0.0
  %251 = vmatpush1.msra.mxu0 0.0
  %252 = vmatprep.subr.mxu0 0.0
  %253 = vmatpush1.msra.mxu0 0.0
  %254 = vmatprep.subr.mxu0 0.0
  %255 = vmatpush1.msra.mxu0 0.0
  %256 = vmatprep.subr.mxu0 0.0
  %257 = vmatpush1.msra.mxu0 0.0
  %258 = vmatprep.mubr.f32.mxu0 0.0
  %259 = vmatmul.mubr.f32.gmra.mrb[0].mxu0 %v192
  %v260 = vpop.f32.mrb[0].mxu0
  %v261 = vadd.f32 %v189, %v260
  %v262 = vpop.f32.mrb[0].mxu0
  %263 = vdwg.mxu0
  %v264 = vadd.f32 %v185, %v261
  %v265 = vxor.u32 %v264, 2147483648
  %v266 = vmul.f32 %v265, 1.442695
  %v267 = vpow.pop %v266
  %v268 = vadd.f32 %v267, 1.0
  %v269 = vrcp.pop %v268
  %v270 = vmul.f32 1.0, %v269
  %272 = vrot.lane.b32.xlu0 %v261, 64
  %v273 = vpop.permute.xlu0 %272
  %v275 = vmul.f32 %v270, %v273
  %277 = vrot.lane.b32.xlu0 %v275, 64
  %v278 = vpop.permute.xlu0 %277
  %v280 = vadd.f32 %v185, %v278
  %v281 = vtanh.pop %v280
  %v282 = vsub.f32 0.0, %v281
  %284 = vrot.lane.b32.xlu0 %v282, 96
  %v285 = vpop.permute.xlu0 %284
  %v287 = vmul.f32 %v270, %v285
  %289 = vrot.lane.b32.xlu0 %v287, 32
  %v290 = vpop.permute.xlu0 %289
  %v292 = vadd.f32 %v281, %v290
  %294 = vrot.lane.b32.xlu0 %v292, 64
  %v295 = vpop.permute.xlu0 %294
  %297 = vst.msk [vmem:[#allocation3] sm:$0xff] %vm190, %v295
  %s298 = scalar_lea.vmem [#allocation2], 8
  %v299 = vld [vmem:[%s298] sm:$0xff]
  %v300 = vsel %vm190, %v295, 0
  %302 = vmatprep.subr.mxu0 0.0
  %303 = vmatpush1.msra.mxu0 %v180
  %304 = vmatprep.subr.mxu0 0.0
  %305 = vmatpush1.msra.mxu0 %v181
  %306 = vmatprep.subr.mxu0 0.0
  %307 = vmatpush1.msra.mxu0 %v182
  %308 = vmatprep.subr.mxu0 0.0
  %309 = vmatpush1.msra.mxu0 %v183
  %310 = vmatprep.subr.mxu0 0.0
  %311 = vmatpush1.msra.mxu0 0.0
  %312 = vmatprep.subr.mxu0 0.0
  %313 = vmatpush1.msra.mxu0 0.0
  %314 = vmatprep.subr.mxu0 0.0
  %315 = vmatpush1.msra.mxu0 0.0
  %316 = vmatprep.subr.mxu0 0.0
  %317 = vmatpush1.msra.mxu0 0.0
  %318 = vmatprep.subr.mxu0 0.0
  %319 = vmatpush1.msra.mxu0 0.0
  %320 = vmatprep.subr.mxu0 0.0
  %321 = vmatpush1.msra.mxu0 0.0
  %322 = vmatprep.subr.mxu0 0.0
  %323 = vmatpush1.msra.mxu0 0.0
  %324 = vmatprep.subr.mxu0 0.0
  %325 = vmatpush1.msra.mxu0 0.0
  %326 = vmatprep.subr.mxu0 0.0
  %327 = vmatpush1.msra.mxu0 0.0
  %328 = vmatprep.subr.mxu0 0.0
  %329 = vmatpush1.msra.mxu0 0.0
  %330 = vmatprep.subr.mxu0 0.0
  %331 = vmatpush1.msra.mxu0 0.0
  %332 = vmatprep.subr.mxu0 0.0
  %333 = vmatpush1.msra.mxu0 0.0
  %334 = vmatprep.subr.mxu0 0.0
  %335 = vmatpush1.msra.mxu0 0.0
  %336 = vmatprep.subr.mxu0 0.0
  %337 = vmatpush1.msra.mxu0 0.0
  %338 = vmatprep.subr.mxu0 0.0
  %339 = vmatpush1.msra.mxu0 0.0
  %340 = vmatprep.subr.mxu0 0.0
  %341 = vmatpush1.msra.mxu0 0.0
  %342 = vmatprep.subr.mxu0 0.0
  %343 = vmatpush1.msra.mxu0 0.0
  %344 = vmatprep.subr.mxu0 0.0
  %345 = vmatpush1.msra.mxu0 0.0
  %346 = vmatprep.subr.mxu0 0.0
  %347 = vmatpush1.msra.mxu0 0.0
  %348 = vmatprep.subr.mxu0 0.0
  %349 = vmatpush1.msra.mxu0 0.0
  %350 = vmatprep.subr.mxu0 0.0
  %351 = vmatpush1.msra.mxu0 0.0
  %352 = vmatprep.subr.mxu0 0.0
  %353 = vmatpush1.msra.mxu0 0.0
  %354 = vmatprep.subr.mxu0 0.0
  %355 = vmatpush1.msra.mxu0 0.0
  %356 = vmatprep.subr.mxu0 0.0
  %357 = vmatpush1.msra.mxu0 0.0
  %358 = vmatprep.subr.mxu0 0.0
  %359 = vmatpush1.msra.mxu0 0.0
  %360 = vmatprep.subr.mxu0 0.0
  %361 = vmatpush1.msra.mxu0 0.0
  %362 = vmatprep.subr.mxu0 0.0
  %363 = vmatpush1.msra.mxu0 0.0
  %364 = vmatprep.subr.mxu0 0.0
  %365 = vmatpush1.msra.mxu0 0.0
  %366 = vmatprep.mubr.f32.mxu0 0.0
  %367 = vmatmul.mubr.f32.gmra.mrb[0].mxu0 %v300
  %v368 = vpop.f32.mrb[0].mxu0
  %v369 = vadd.f32 %v189, %v368
  %v370 = vpop.f32.mrb[0].mxu0
  %371 = vdwg.mxu0
  %v372 = vadd.f32 %v299, %v369
  %v373 = vxor.u32 %v372, 2147483648
  %v374 = vmul.f32 %v373, 1.442695
  %v375 = vpow.pop %v374
  %v376 = vadd.f32 %v375, 1.0
  %v377 = vrcp.pop %v376
  %v378 = vmul.f32 1.0, %v377
  %380 = vrot.lane.b32.xlu0 %v369, 64
  %v381 = vpop.permute.xlu0 %380
  %v383 = vmul.f32 %v378, %v381
  %385 = vrot.lane.b32.xlu0 %v383, 64
  %v386 = vpop.permute.xlu0 %385
  %v388 = vadd.f32 %v299, %v386
  %v389 = vtanh.pop %v388
  %v390 = vsub.f32 %v292, %v389
  %392 = vrot.lane.b32.xlu0 %v390, 96
  %v393 = vpop.permute.xlu0 %392
  %v395 = vmul.f32 %v378, %v393
  %397 = vrot.lane.b32.xlu0 %v395, 32
  %v398 = vpop.permute.xlu0 %397
  %v400 = vadd.f32 %v389, %v398
  %402 = vrot.lane.b32.xlu0 %v400, 64
  %v403 = vpop.permute.xlu0 %402
  %s405 = scalar_lea.vmem [#allocation3], 8
  %406 = vst.msk [vmem:[%s405] sm:$0xff] %vm190, %v403
  %s407 = scalar_lea.vmem [#allocation2], 16
  %v408 = vld [vmem:[%s407] sm:$0xff]
  %v409 = vsel %vm190, %v403, 0
  %411 = vmatprep.subr.mxu0 0.0
  %412 = vmatpush1.msra.mxu0 %v180
  %413 = vmatprep.subr.mxu0 0.0
  %414 = vmatpush1.msra.mxu0 %v181
  %415 = vmatprep.subr.mxu0 0.0
  %416 = vmatpush1.msra.mxu0 %v182
  %417 = vmatprep.subr.mxu0 0.0
  %418 = vmatpush1.msra.mxu0 %v183
  %419 = vmatprep.subr.mxu0 0.0
  %420 = vmatpush1.msra.mxu0 0.0
  %421 = vmatprep.subr.mxu0 0.0
  %422 = vmatpush1.msra.mxu0 0.0
  %423 = vmatprep.subr.mxu0 0.0
  %424 = vmatpush1.msra.mxu0 0.0
  %425 = vmatprep.subr.mxu0 0.0
  %426 = vmatpush1.msra.mxu0 0.0
  %427 = vmatprep.subr.mxu0 0.0
  %428 = vmatpush1.msra.mxu0 0.0
  %429 = vmatprep.subr.mxu0 0.0
  %430 = vmatpush1.msra.mxu0 0.0
  %431 = vmatprep.subr.mxu0 0.0
  %432 = vmatpush1.msra.mxu0 0.0
  %433 = vmatprep.subr.mxu0 0.0
  %434 = vmatpush1.msra.mxu0 0.0
  %435 = vmatprep.subr.mxu0 0.0
  %436 = vmatpush1.msra.mxu0 0.0
  %437 = vmatprep.subr.mxu0 0.0
  %438 = vmatpush1.msra.mxu0 0.0
  %439 = vmatprep.subr.mxu0 0.0
  %440 = vmatpush1.msra.mxu0 0.0
  %441 = vmatprep.subr.mxu0 0.0
  %442 = vmatpush1.msra.mxu0 0.0
  %443 = vmatprep.subr.mxu0 0.0
  %444 = vmatpush1.msra.mxu0 0.0
  %445 = vmatprep.subr.mxu0 0.0
  %446 = vmatpush1.msra.mxu0 0.0
  %447 = vmatprep.subr.mxu0 0.0
  %448 = vmatpush1.msra.mxu0 0.0
  %449 = vmatprep.subr.mxu0 0.0
  %450 = vmatpush1.msra.mxu0 0.0
  %451 = vmatprep.subr.mxu0 0.0
  %452 = vmatpush1.msra.mxu0 0.0
  %453 = vmatprep.subr.mxu0 0.0
  %454 = vmatpush1.msra.mxu0 0.0
  %455 = vmatprep.subr.mxu0 0.0
  %456 = vmatpush1.msra.mxu0 0.0
  %457 = vmatprep.subr.mxu0 0.0
  %458 = vmatpush1.msra.mxu0 0.0
  %459 = vmatprep.subr.mxu0 0.0
  %460 = vmatpush1.msra.mxu0 0.0
  %461 = vmatprep.subr.mxu0 0.0
  %462 = vmatpush1.msra.mxu0 0.0
  %463 = vmatprep.subr.mxu0 0.0
  %464 = vmatpush1.msra.mxu0 0.0
  %465 = vmatprep.subr.mxu0 0.0
  %466 = vmatpush1.msra.mxu0 0.0
  %467 = vmatprep.subr.mxu0 0.0
  %468 = vmatpush1.msra.mxu0 0.0
  %469 = vmatprep.subr.mxu0 0.0
  %470 = vmatpush1.msra.mxu0 0.0
  %471 = vmatprep.subr.mxu0 0.0
  %472 = vmatpush1.msra.mxu0 0.0
  %473 = vmatprep.subr.mxu0 0.0
  %474 = vmatpush1.msra.mxu0 0.0
  %475 = vmatprep.mubr.f32.mxu0 0.0
  %476 = vmatmul.mubr.f32.gmra.mrb[0].mxu0 %v409
  %v477 = vpop.f32.mrb[0].mxu0
  %v478 = vadd.f32 %v189, %v477
  %v479 = vpop.f32.mrb[0].mxu0
  %480 = vdwg.mxu0
  %v481 = vadd.f32 %v408, %v478
  %v482 = vxor.u32 %v481, 2147483648
  %v483 = vmul.f32 %v482, 1.442695
  %v484 = vpow.pop %v483
  %v485 = vadd.f32 %v484, 1.0
  %v486 = vrcp.pop %v485
  %v487 = vmul.f32 1.0, %v486
  %489 = vrot.lane.b32.xlu0 %v478, 64
  %v490 = vpop.permute.xlu0 %489
  %v492 = vmul.f32 %v487, %v490
  %494 = vrot.lane.b32.xlu0 %v492, 64
  %v495 = vpop.permute.xlu0 %494
  %v497 = vadd.f32 %v408, %v495
  %v498 = vtanh.pop %v497
  %v499 = vsub.f32 %v400, %v498
  %501 = vrot.lane.b32.xlu0 %v499, 96
  %v502 = vpop.permute.xlu0 %501
  %v504 = vmul.f32 %v487, %v502
  %506 = vrot.lane.b32.xlu0 %v504, 32
  %v507 = vpop.permute.xlu0 %506
  %v509 = vadd.f32 %v498, %v507
  %511 = vrot.lane.b32.xlu0 %v509, 64
  %v512 = vpop.permute.xlu0 %511
  %s514 = scalar_lea.vmem [#allocation3], 16
  %515 = vst.msk [vmem:[%s514] sm:$0xff] %vm190, %v512
  %s516 = scalar_lea.vmem [#allocation2], 24
  %v517 = vld [vmem:[%s516] sm:$0xff]
  %v518 = vsel %vm190, %v512, 0
  %520 = vmatprep.subr.mxu0 0.0
  %521 = vmatpush1.msra.mxu0 %v180
  %522 = vmatprep.subr.mxu0 0.0
  %523 = vmatpush1.msra.mxu0 %v181
  %524 = vmatprep.subr.mxu0 0.0
  %525 = vmatpush1.msra.mxu0 %v182
  %526 = vmatprep.subr.mxu0 0.0
  %527 = vmatpush1.msra.mxu0 %v183
  %528 = vmatprep.subr.mxu0 0.0
  %529 = vmatpush1.msra.mxu0 0.0
  %530 = vmatprep.subr.mxu0 0.0
  %531 = vmatpush1.msra.mxu0 0.0
  %532 = vmatprep.subr.mxu0 0.0
  %533 = vmatpush1.msra.mxu0 0.0
  %534 = vmatprep.subr.mxu0 0.0
  %535 = vmatpush1.msra.mxu0 0.0
  %536 = vmatprep.subr.mxu0 0.0
  %537 = vmatpush1.msra.mxu0 0.0
  %538 = vmatprep.subr.mxu0 0.0
  %539 = vmatpush1.msra.mxu0 0.0
  %540 = vmatprep.subr.mxu0 0.0
  %541 = vmatpush1.msra.mxu0 0.0
  %542 = vmatprep.subr.mxu0 0.0
  %543 = vmatpush1.msra.mxu0 0.0
  %544 = vmatprep.subr.mxu0 0.0
  %545 = vmatpush1.msra.mxu0 0.0
  %546 = vmatprep.subr.mxu0 0.0
  %547 = vmatpush1.msra.mxu0 0.0
  %548 = vmatprep.subr.mxu0 0.0
  %549 = vmatpush1.msra.mxu0 0.0
  %550 = vmatprep.subr.mxu0 0.0
  %551 = vmatpush1.msra.mxu0 0.0
  %552 = vmatprep.subr.mxu0 0.0
  %553 = vmatpush1.msra.mxu0 0.0
  %554 = vmatprep.subr.mxu0 0.0
  %555 = vmatpush1.msra.mxu0 0.0
  %556 = vmatprep.subr.mxu0 0.0
  %557 = vmatpush1.msra.mxu0 0.0
  %558 = vmatprep.subr.mxu0 0.0
  %559 = vmatpush1.msra.mxu0 0.0
  %560 = vmatprep.subr.mxu0 0.0
  %561 = vmatpush1.msra.mxu0 0.0
  %562 = vmatprep.subr.mxu0 0.0
  %563 = vmatpush1.msra.mxu0 0.0
  %564 = vmatprep.subr.mxu0 0.0
  %565 = vmatpush1.msra.mxu0 0.0
  %566 = vmatprep.subr.mxu0 0.0
  %567 = vmatpush1.msra.mxu0 0.0
  %568 = vmatprep.subr.mxu0 0.0
  %569 = vmatpush1.msra.mxu0 0.0
  %570 = vmatprep.subr.mxu0 0.0
  %571 = vmatpush1.msra.mxu0 0.0
  %572 = vmatprep.subr.mxu0 0.0
  %573 = vmatpush1.msra.mxu0 0.0
  %574 = vmatprep.subr.mxu0 0.0
  %575 = vmatpush1.msra.mxu0 0.0
  %576 = vmatprep.subr.mxu0 0.0
  %577 = vmatpush1.msra.mxu0 0.0
  %578 = vmatprep.subr.mxu0 0.0
  %579 = vmatpush1.msra.mxu0 0.0
  %580 = vmatprep.subr.mxu0 0.0
  %581 = vmatpush1.msra.mxu0 0.0
  %582 = vmatprep.subr.mxu0 0.0
  %583 = vmatpush1.msra.mxu0 0.0
  %584 = vmatprep.mubr.f32.mxu0 0.0
  %585 = vmatmul.mubr.f32.gmra.mrb[0].mxu0 %v518
  %v586 = vpop.f32.mrb[0].mxu0
  %v587 = vadd.f32 %v189, %v586
  %v588 = vpop.f32.mrb[0].mxu0
  %589 = vdwg.mxu0
  %v590 = vadd.f32 %v517, %v587
  %v591 = vxor.u32 %v590, 2147483648
  %v592 = vmul.f32 %v591, 1.442695
  %v593 = vpow.pop %v592
  %v594 = vadd.f32 %v593, 1.0
  %v595 = vrcp.pop %v594
  %v596 = vmul.f32 1.0, %v595
  %598 = vrot.lane.b32.xlu0 %v587, 64
  %v599 = vpop.permute.xlu0 %598
  %v601 = vmul.f32 %v596, %v599
  %603 = vrot.lane.b32.xlu0 %v601, 64
  %v604 = vpop.permute.xlu0 %603
  %v606 = vadd.f32 %v517, %v604
  %v607 = vtanh.pop %v606
  %v608 = vsub.f32 %v509, %v607
  %610 = vrot.lane.b32.xlu0 %v608, 96
  %v611 = vpop.permute.xlu0 %610
  %v613 = vmul.f32 %v596, %v611
  %615 = vrot.lane.b32.xlu0 %v613, 32
  %v616 = vpop.permute.xlu0 %615
  %v618 = vadd.f32 %v607, %v616
  %620 = vrot.lane.b32.xlu0 %v618, 64
  %v621 = vpop.permute.xlu0 %620
  %s623 = scalar_lea.vmem [#allocation3], 24
  %624 = vst.msk [vmem:[%s623] sm:$0xff] %vm190, %v621
  %s625 = scalar_lea.vmem [#allocation2], 32
  %v626 = vld [vmem:[%s625] sm:$0xff]
  %v627 = vsel %vm190, %v621, 0
  %629 = vmatprep.subr.mxu0 0.0
  %630 = vmatpush1.msra.mxu0 %v180
  %631 = vmatprep.subr.mxu0 0.0
  %632 = vmatpush1.msra.mxu0 %v181
  %633 = vmatprep.subr.mxu0 0.0
  %634 = vmatpush1.msra.mxu0 %v182
  %635 = vmatprep.subr.mxu0 0.0
  %636 = vmatpush1.msra.mxu0 %v183
  %637 = vmatprep.subr.mxu0 0.0
  %638 = vmatpush1.msra.mxu0 0.0
  %639 = vmatprep.subr.mxu0 0.0
  %640 = vmatpush1.msra.mxu0 0.0
  %641 = vmatprep.subr.mxu0 0.0
  %642 = vmatpush1.msra.mxu0 0.0
  %643 = vmatprep.subr.mxu0 0.0
  %644 = vmatpush1.msra.mxu0 0.0
  %645 = vmatprep.subr.mxu0 0.0
  %646 = vmatpush1.msra.mxu0 0.0
  %647 = vmatprep.subr.mxu0 0.0
  %648 = vmatpush1.msra.mxu0 0.0
  %649 = vmatprep.subr.mxu0 0.0
  %650 = vmatpush1.msra.mxu0 0.0
  %651 = vmatprep.subr.mxu0 0.0
  %652 = vmatpush1.msra.mxu0 0.0
  %653 = vmatprep.subr.mxu0 0.0
  %654 = vmatpush1.msra.mxu0 0.0
  %655 = vmatprep.subr.mxu0 0.0
  %656 = vmatpush1.msra.mxu0 0.0
  %657 = vmatprep.subr.mxu0 0.0
  %658 = vmatpush1.msra.mxu0 0.0
  %659 = vmatprep.subr.mxu0 0.0
  %660 = vmatpush1.msra.mxu0 0.0
  %661 = vmatprep.subr.mxu0 0.0
  %662 = vmatpush1.msra.mxu0 0.0
  %663 = vmatprep.subr.mxu0 0.0
  %664 = vmatpush1.msra.mxu0 0.0
  %665 = vmatprep.subr.mxu0 0.0
  %666 = vmatpush1.msra.mxu0 0.0
  %667 = vmatprep.subr.mxu0 0.0
  %668 = vmatpush1.msra.mxu0 0.0
  %669 = vmatprep.subr.mxu0 0.0
  %670 = vmatpush1.msra.mxu0 0.0
  %671 = vmatprep.subr.mxu0 0.0
  %672 = vmatpush1.msra.mxu0 0.0
  %673 = vmatprep.subr.mxu0 0.0
  %674 = vmatpush1.msra.mxu0 0.0
  %675 = vmatprep.subr.mxu0 0.0
  %676 = vmatpush1.msra.mxu0 0.0
  %677 = vmatprep.subr.mxu0 0.0
  %678 = vmatpush1.msra.mxu0 0.0
  %679 = vmatprep.subr.mxu0 0.0
  %680 = vmatpush1.msra.mxu0 0.0
  %681 = vmatprep.subr.mxu0 0.0
  %682 = vmatpush1.msra.mxu0 0.0
  %683 = vmatprep.subr.mxu0 0.0
  %684 = vmatpush1.msra.mxu0 0.0
  %685 = vmatprep.subr.mxu0 0.0
  %686 = vmatpush1.msra.mxu0 0.0
  %687 = vmatprep.subr.mxu0 0.0
  %688 = vmatpush1.msra.mxu0 0.0
  %689 = vmatprep.subr.mxu0 0.0
  %690 = vmatpush1.msra.mxu0 0.0
  %691 = vmatprep.subr.mxu0 0.0
  %692 = vmatpush1.msra.mxu0 0.0
  %693 = vmatprep.mubr.f32.mxu0 0.0
  %694 = vmatmul.mubr.f32.gmra.mrb[0].mxu0 %v627
  %v695 = vpop.f32.mrb[0].mxu0
  %v696 = vadd.f32 %v189, %v695
  %v697 = vpop.f32.mrb[0].mxu0
  %698 = vdwg.mxu0
  %v699 = vadd.f32 %v626, %v696
  %v700 = vxor.u32 %v699, 2147483648
  %v701 = vmul.f32 %v700, 1.442695
  %v702 = vpow.pop %v701
  %v703 = vadd.f32 %v702, 1.0
  %v704 = vrcp.pop %v703
  %v705 = vmul.f32 1.0, %v704
  %707 = vrot.lane.b32.xlu0 %v696, 64
  %v708 = vpop.permute.xlu0 %707
  %v710 = vmul.f32 %v705, %v708
  %712 = vrot.lane.b32.xlu0 %v710, 64
  %v713 = vpop.permute.xlu0 %712
  %v715 = vadd.f32 %v626, %v713
  %v716 = vtanh.pop %v715
  %v717 = vsub.f32 %v618, %v716
  %719 = vrot.lane.b32.xlu0 %v717, 96
  %v720 = vpop.permute.xlu0 %719
  %v722 = vmul.f32 %v705, %v720
  %724 = vrot.lane.b32.xlu0 %v722, 32
  %v725 = vpop.permute.xlu0 %724
  %v727 = vadd.f32 %v716, %v725
  %729 = vrot.lane.b32.xlu0 %v727, 64
  %v730 = vpop.permute.xlu0 %729
  %s732 = scalar_lea.vmem [#allocation3], 32
  %733 = vst.msk [vmem:[%s732] sm:$0xff] %vm190, %v730
  %s734 = scalar_lea.vmem [#allocation2], 40
  %v735 = vld [vmem:[%s734] sm:$0xff]
  %v736 = vsel %vm190, %v730, 0
  %738 = vmatprep.subr.mxu0 0.0
  %739 = vmatpush1.msra.mxu0 %v180
  %740 = vmatprep.subr.mxu0 0.0
  %741 = vmatpush1.msra.mxu0 %v181
  %742 = vmatprep.subr.mxu0 0.0
  %743 = vmatpush1.msra.mxu0 %v182
  %744 = vmatprep.subr.mxu0 0.0
  %745 = vmatpush1.msra.mxu0 %v183
  %746 = vmatprep.subr.mxu0 0.0
  %747 = vmatpush1.msra.mxu0 0.0
  %748 = vmatprep.subr.mxu0 0.0
  %749 = vmatpush1.msra.mxu0 0.0
  %750 = vmatprep.subr.mxu0 0.0
  %751 = vmatpush1.msra.mxu0 0.0
  %752 = vmatprep.subr.mxu0 0.0
  %753 = vmatpush1.msra.mxu0 0.0
  %754 = vmatprep.subr.mxu0 0.0
  %755 = vmatpush1.msra.mxu0 0.0
  %756 = vmatprep.subr.mxu0 0.0
  %757 = vmatpush1.msra.mxu0 0.0
  %758 = vmatprep.subr.mxu0 0.0
  %759 = vmatpush1.msra.mxu0 0.0
  %760 = vmatprep.subr.mxu0 0.0
  %761 = vmatpush1.msra.mxu0 0.0
  %762 = vmatprep.subr.mxu0 0.0
  %763 = vmatpush1.msra.mxu0 0.0
  %764 = vmatprep.subr.mxu0 0.0
  %765 = vmatpush1.msra.mxu0 0.0
  %766 = vmatprep.subr.mxu0 0.0
  %767 = vmatpush1.msra.mxu0 0.0
  %768 = vmatprep.subr.mxu0 0.0
  %769 = vmatpush1.msra.mxu0 0.0
  %770 = vmatprep.subr.mxu0 0.0
  %771 = vmatpush1.msra.mxu0 0.0
  %772 = vmatprep.subr.mxu0 0.0
  %773 = vmatpush1.msra.mxu0 0.0
  %774 = vmatprep.subr.mxu0 0.0
  %775 = vmatpush1.msra.mxu0 0.0
  %776 = vmatprep.subr.mxu0 0.0
  %777 = vmatpush1.msra.mxu0 0.0
  %778 = vmatprep.subr.mxu0 0.0
  %779 = vmatpush1.msra.mxu0 0.0
  %780 = vmatprep.subr.mxu0 0.0
  %781 = vmatpush1.msra.mxu0 0.0
  %782 = vmatprep.subr.mxu0 0.0
  %783 = vmatpush1.msra.mxu0 0.0
  %784 = vmatprep.subr.mxu0 0.0
  %785 = vmatpush1.msra.mxu0 0.0
  %786 = vmatprep.subr.mxu0 0.0
  %787 = vmatpush1.msra.mxu0 0.0
  %788 = vmatprep.subr.mxu0 0.0
  %789 = vmatpush1.msra.mxu0 0.0
  %790 = vmatprep.subr.mxu0 0.0
  %791 = vmatpush1.msra.mxu0 0.0
  %792 = vmatprep.subr.mxu0 0.0
  %793 = vmatpush1.msra.mxu0 0.0
  %794 = vmatprep.subr.mxu0 0.0
  %795 = vmatpush1.msra.mxu0 0.0
  %796 = vmatprep.subr.mxu0 0.0
  %797 = vmatpush1.msra.mxu0 0.0
  %798 = vmatprep.subr.mxu0 0.0
  %799 = vmatpush1.msra.mxu0 0.0
  %800 = vmatprep.subr.mxu0 0.0
  %801 = vmatpush1.msra.mxu0 0.0
  %802 = vmatprep.mubr.f32.mxu0 0.0
  %803 = vmatmul.mubr.f32.gmra.mrb[0].mxu0 %v736
  %v804 = vpop.f32.mrb[0].mxu0
  %v805 = vadd.f32 %v189, %v804
  %v806 = vpop.f32.mrb[0].mxu0
  %807 = vdwg.mxu0
  %v808 = vadd.f32 %v735, %v805
  %v809 = vxor.u32 %v808, 2147483648
  %v810 = vmul.f32 %v809, 1.442695
  %v811 = vpow.pop %v810
  %v812 = vadd.f32 %v811, 1.0
  %v813 = vrcp.pop %v812
  %v814 = vmul.f32 1.0, %v813
  %816 = vrot.lane.b32.xlu0 %v805, 64
  %v817 = vpop.permute.xlu0 %816
  %v819 = vmul.f32 %v814, %v817
  %821 = vrot.lane.b32.xlu0 %v819, 64
  %v822 = vpop.permute.xlu0 %821
  %v824 = vadd.f32 %v735, %v822
  %v825 = vtanh.pop %v824
  %v826 = vsub.f32 %v727, %v825
  %828 = vrot.lane.b32.xlu0 %v826, 96
  %v829 = vpop.permute.xlu0 %828
  %v831 = vmul.f32 %v814, %v829
  %833 = vrot.lane.b32.xlu0 %v831, 32
  %v834 = vpop.permute.xlu0 %833
  %v836 = vadd.f32 %v825, %v834
  %838 = vrot.lane.b32.xlu0 %v836, 64
  %v839 = vpop.permute.xlu0 %838
  %s841 = scalar_lea.vmem [#allocation3], 40
  %842 = vst.msk [vmem:[%s841] sm:$0xff] %vm190, %v839
  %s843 = scalar_lea.vmem [#allocation2], 48
  %v844 = vld [vmem:[%s843] sm:$0xff]
  %v845 = vsel %vm190, %v839, 0
  %847 = vmatprep.subr.mxu0 0.0
  %848 = vmatpush1.msra.mxu0 %v180
  %849 = vmatprep.subr.mxu0 0.0
  %850 = vmatpush1.msra.mxu0 %v181
  %851 = vmatprep.subr.mxu0 0.0
  %852 = vmatpush1.msra.mxu0 %v182
  %853 = vmatprep.subr.mxu0 0.0
  %854 = vmatpush1.msra.mxu0 %v183
  %855 = vmatprep.subr.mxu0 0.0
  %856 = vmatpush1.msra.mxu0 0.0
  %857 = vmatprep.subr.mxu0 0.0
  %858 = vmatpush1.msra.mxu0 0.0
  %859 = vmatprep.subr.mxu0 0.0
  %860 = vmatpush1.msra.mxu0 0.0
  %861 = vmatprep.subr.mxu0 0.0
  %862 = vmatpush1.msra.mxu0 0.0
  %863 = vmatprep.subr.mxu0 0.0
  %864 = vmatpush1.msra.mxu0 0.0
  %865 = vmatprep.subr.mxu0 0.0
  %866 = vmatpush1.msra.mxu0 0.0
  %867 = vmatprep.subr.mxu0 0.0
  %868 = vmatpush1.msra.mxu0 0.0
  %869 = vmatprep.subr.mxu0 0.0
  %870 = vmatpush1.msra.mxu0 0.0
  %871 = vmatprep.subr.mxu0 0.0
  %872 = vmatpush1.msra.mxu0 0.0
  %873 = vmatprep.subr.mxu0 0.0
  %874 = vmatpush1.msra.mxu0 0.0
  %875 = vmatprep.subr.mxu0 0.0
  %876 = vmatpush1.msra.mxu0 0.0
  %877 = vmatprep.subr.mxu0 0.0
  %878 = vmatpush1.msra.mxu0 0.0
  %879 = vmatprep.subr.mxu0 0.0
  %880 = vmatpush1.msra.mxu0 0.0
  %881 = vmatprep.subr.mxu0 0.0
  %882 = vmatpush1.msra.mxu0 0.0
  %883 = vmatprep.subr.mxu0 0.0
  %884 = vmatpush1.msra.mxu0 0.0
  %885 = vmatprep.subr.mxu0 0.0
  %886 = vmatpush1.msra.mxu0 0.0
  %887 = vmatprep.subr.mxu0 0.0
  %888 = vmatpush1.msra.mxu0 0.0
  %889 = vmatprep.subr.mxu0 0.0
  %890 = vmatpush1.msra.mxu0 0.0
  %891 = vmatprep.subr.mxu0 0.0
  %892 = vmatpush1.msra.mxu0 0.0
  %893 = vmatprep.subr.mxu0 0.0
  %894 = vmatpush1.msra.mxu0 0.0
  %895 = vmatprep.subr.mxu0 0.0
  %896 = vmatpush1.msra.mxu0 0.0
  %897 = vmatprep.subr.mxu0 0.0
  %898 = vmatpush1.msra.mxu0 0.0
  %899 = vmatprep.subr.mxu0 0.0
  %900 = vmatpush1.msra.mxu0 0.0
  %901 = vmatprep.subr.mxu0 0.0
  %902 = vmatpush1.msra.mxu0 0.0
  %903 = vmatprep.subr.mxu0 0.0
  %904 = vmatpush1.msra.mxu0 0.0
  %905 = vmatprep.subr.mxu0 0.0
  %906 = vmatpush1.msra.mxu0 0.0
  %907 = vmatprep.subr.mxu0 0.0
  %908 = vmatpush1.msra.mxu0 0.0
  %909 = vmatprep.subr.mxu0 0.0
  %910 = vmatpush1.msra.mxu0 0.0
  %911 = vmatprep.mubr.f32.mxu0 0.0
  %912 = vmatmul.mubr.f32.gmra.mrb[0].mxu0 %v845
  %v913 = vpop.f32.mrb[0].mxu0
  %v914 = vadd.f32 %v189, %v913
  %v915 = vpop.f32.mrb[0].mxu0
  %916 = vdwg.mxu0
  %v917 = vadd.f32 %v844, %v914
  %v918 = vxor.u32 %v917, 2147483648
  %v919 = vmul.f32 %v918, 1.442695
  %v920 = vpow.pop %v919
  %v921 = vadd.f32 %v920, 1.0
  %v922 = vrcp.pop %v921
  %v923 = vmul.f32 1.0, %v922
  %925 = vrot.lane.b32.xlu0 %v914, 64
  %v926 = vpop.permute.xlu0 %925
  %v928 = vmul.f32 %v923, %v926
  %930 = vrot.lane.b32.xlu0 %v928, 64
  %v931 = vpop.permute.xlu0 %930
  %v933 = vadd.f32 %v844, %v931
  %v934 = vtanh.pop %v933
  %v935 = vsub.f32 %v836, %v934
  %937 = vrot.lane.b32.xlu0 %v935, 96
  %v938 = vpop.permute.xlu0 %937
  %v940 = vmul.f32 %v923, %v938
  %942 = vrot.lane.b32.xlu0 %v940, 32
  %v943 = vpop.permute.xlu0 %942
  %v945 = vadd.f32 %v934, %v943
  %947 = vrot.lane.b32.xlu0 %v945, 64
  %v948 = vpop.permute.xlu0 %947
  %s950 = scalar_lea.vmem [#allocation3], 48
  %951 = vst.msk [vmem:[%s950] sm:$0xff] %vm190, %v948
  %s952 = scalar_lea.vmem [#allocation2], 56
  %v953 = vld [vmem:[%s952] sm:$0xff]
  %v954 = vsel %vm190, %v948, 0
  %956 = vmatprep.subr.mxu0 0.0
  %957 = vmatpush1.msra.mxu0 %v180
  %958 = vmatprep.subr.mxu0 0.0
  %959 = vmatpush1.msra.mxu0 %v181
  %960 = vmatprep.subr.mxu0 0.0
  %961 = vmatpush1.msra.mxu0 %v182
  %962 = vmatprep.subr.mxu0 0.0
  %963 = vmatpush1.msra.mxu0 %v183
  %964 = vmatprep.subr.mxu0 0.0
  %965 = vmatpush1.msra.mxu0 0.0
  %966 = vmatprep.subr.mxu0 0.0
  %967 = vmatpush1.msra.mxu0 0.0
  %968 = vmatprep.subr.mxu0 0.0
  %969 = vmatpush1.msra.mxu0 0.0
  %970 = vmatprep.subr.mxu0 0.0
  %971 = vmatpush1.msra.mxu0 0.0
  %972 = vmatprep.subr.mxu0 0.0
  %973 = vmatpush1.msra.mxu0 0.0
  %974 = vmatprep.subr.mxu0 0.0
  %975 = vmatpush1.msra.mxu0 0.0
  %976 = vmatprep.subr.mxu0 0.0
  %977 = vmatpush1.msra.mxu0 0.0
  %978 = vmatprep.subr.mxu0 0.0
  %979 = vmatpush1.msra.mxu0 0.0
  %980 = vmatprep.subr.mxu0 0.0
  %981 = vmatpush1.msra.mxu0 0.0
  %982 = vmatprep.subr.mxu0 0.0
  %983 = vmatpush1.msra.mxu0 0.0
  %984 = vmatprep.subr.mxu0 0.0
  %985 = vmatpush1.msra.mxu0 0.0
  %986 = vmatprep.subr.mxu0 0.0
  %987 = vmatpush1.msra.mxu0 0.0
  %988 = vmatprep.subr.mxu0 0.0
  %989 = vmatpush1.msra.mxu0 0.0
  %990 = vmatprep.subr.mxu0 0.0
  %991 = vmatpush1.msra.mxu0 0.0
  %992 = vmatprep.subr.mxu0 0.0
  %993 = vmatpush1.msra.mxu0 0.0
  %994 = vmatprep.subr.mxu0 0.0
  %995 = vmatpush1.msra.mxu0 0.0
  %996 = vmatprep.subr.mxu0 0.0
  %997 = vmatpush1.msra.mxu0 0.0
  %998 = vmatprep.subr.mxu0 0.0
  %999 = vmatpush1.msra.mxu0 0.0
  %1000 = vmatprep.subr.mxu0 0.0
  %1001 = vmatpush1.msra.mxu0 0.0
  %1002 = vmatprep.subr.mxu0 0.0
  %1003 = vmatpush1.msra.mxu0 0.0
  %1004 = vmatprep.subr.mxu0 0.0
  %1005 = vmatpush1.msra.mxu0 0.0
  %1006 = vmatprep.subr.mxu0 0.0
  %1007 = vmatpush1.msra.mxu0 0.0
  %1008 = vmatprep.subr.mxu0 0.0
  %1009 = vmatpush1.msra.mxu0 0.0
  %1010 = vmatprep.subr.mxu0 0.0
  %1011 = vmatpush1.msra.mxu0 0.0
  %1012 = vmatprep.subr.mxu0 0.0
  %1013 = vmatpush1.msra.mxu0 0.0
  %1014 = vmatprep.subr.mxu0 0.0
  %1015 = vmatpush1.msra.mxu0 0.0
  %1016 = vmatprep.subr.mxu0 0.0
  %1017 = vmatpush1.msra.mxu0 0.0
  %1018 = vmatprep.subr.mxu0 0.0
  %1019 = vmatpush1.msra.mxu0 0.0
  %1020 = vmatprep.mubr.f32.mxu0 0.0
  %1021 = vmatmul.mubr.f32.gmra.mrb[0].mxu0 %v954
  %v1022 = vpop.f32.mrb[0].mxu0
  %v1023 = vadd.f32 %v189, %v1022
  %v1024 = vpop.f32.mrb[0].mxu0
  %1025 = vdwg.mxu0
  %v1026 = vadd.f32 %v953, %v1023
  %v1027 = vxor.u32 %v1026, 2147483648
  %v1028 = vmul.f32 %v1027, 1.442695
  %v1029 = vpow.pop %v1028
  %v1030 = vadd.f32 %v1029, 1.0
  %v1031 = vrcp.pop %v1030
  %v1032 = vmul.f32 1.0, %v1031
  %1034 = vrot.lane.b32.xlu0 %v1023, 64
  %v1035 = vpop.permute.xlu0 %1034
  %v1037 = vmul.f32 %v1032, %v1035
  %1039 = vrot.lane.b32.xlu0 %v1037, 64
  %v1040 = vpop.permute.xlu0 %1039
  %v1042 = vadd.f32 %v953, %v1040
  %v1043 = vtanh.pop %v1042
  %v1044 = vsub.f32 %v945, %v1043
  %1046 = vrot.lane.b32.xlu0 %v1044, 96
  %v1047 = vpop.permute.xlu0 %1046
  %v1049 = vmul.f32 %v1032, %v1047
  %1051 = vrot.lane.b32.xlu0 %v1049, 32
  %v1052 = vpop.permute.xlu0 %1051
  %v1054 = vadd.f32 %v1043, %v1052
  %1056 = vrot.lane.b32.xlu0 %v1054, 64
  %v1057 = vpop.permute.xlu0 %1056
  %s1059 = scalar_lea.vmem [#allocation3], 56
  %1060 = vst.msk [vmem:[%s1059] sm:$0xff] %vm190, %v1057
  %v1061 = vld [vmem:[#allocation3] sm:$0xff]
  %v1062 = vld [vmem:[#allocation3 + $0x8] sm:$0xff]
  %v1063 = vld [vmem:[#allocation3 + $0x10] sm:$0xff]
  %v1064 = vld [vmem:[#allocation3 + $0x18] sm:$0xff]
  %v1065 = vld [vmem:[#allocation3 + $0x20] sm:$0xff]
  %v1066 = vld [vmem:[#allocation3 + $0x28] sm:$0xff]
  %v1067 = vld [vmem:[#allocation3 + $0x30] sm:$0xff]
  %v1068 = vld [vmem:[#allocation3 + $0x38] sm:$0xff]
  %v1069 = vsel %vm190, %v1061, 0.0
  %1070 = vadd.xlane.f32.xlu0 %v1069
  %v1071 = vpop.xlane.xlu0 %1070
  %v1072 = vsel %vm190, %v1062, 0.0
  %1073 = vadd.xlane.f32.xlu0 %v1072
  %v1074 = vpop.xlane.xlu0 %1073
  %v1075 = vsel %vm190, %v1063, 0.0
  %1076 = vadd.xlane.f32.xlu0 %v1075
  %v1077 = vpop.xlane.xlu0 %1076
  %v1078 = vsel %vm190, %v1064, 0.0
  %1079 = vadd.xlane.f32.xlu0 %v1078
  %v1080 = vpop.xlane.xlu0 %1079
  %v1081 = vsel %vm190, %v1065, 0.0
  %1082 = vadd.xlane.f32.xlu0 %v1081
  %v1083 = vpop.xlane.xlu0 %1082
  %v1084 = vsel %vm190, %v1066, 0.0
  %1085 = vadd.xlane.f32.xlu0 %v1084
  %v1086 = vpop.xlane.xlu0 %1085
  %v1087 = vsel %vm190, %v1067, 0.0
  %1088 = vadd.xlane.f32.xlu0 %v1087
  %v1089 = vpop.xlane.xlu0 %1088
  %v1090 = vsel %vm190, %v1068, 0.0
  %1091 = vadd.xlane.f32.xlu0 %v1090
  %v1092 = vpop.xlane.xlu0 %1091
  %v1093 = vrcp.pop 32.0
  %v1094 = vmul.f32 %v1071, %v1093
  %v1095 = vmul.f32 %v1074, %v1093
  %v1096 = vmul.f32 %v1077, %v1093
  %v1097 = vmul.f32 %v1080, %v1093
  %v1098 = vmul.f32 %v1083, %v1093
  %v1099 = vmul.f32 %v1086, %v1093
  %v1100 = vmul.f32 %v1089, %v1093
  %v1101 = vmul.f32 %v1092, %v1093
  %v1102 = vsub.f32 %v1061, %v1094
  %v1103 = vsub.f32 %v1062, %v1095
  %v1104 = vsub.f32 %v1063, %v1096
  %v1105 = vsub.f32 %v1064, %v1097
  %v1106 = vsub.f32 %v1065, %v1098
  %v1107 = vsub.f32 %v1066, %v1099
  %v1108 = vsub.f32 %v1067, %v1100
  %v1109 = vsub.f32 %v1068, %v1101
  %v1110 = vmul.f32 %v1102, %v1102
  %v1111 = vmul.f32 %v1103, %v1103
  %v1112 = vmul.f32 %v1104, %v1104
  %v1113 = vmul.f32 %v1105, %v1105
  %v1114 = vmul.f32 %v1106, %v1106
  %v1115 = vmul.f32 %v1107, %v1107
  %v1116 = vmul.f32 %v1108, %v1108
  %v1117 = vmul.f32 %v1109, %v1109
  %v1118 = vsel %vm190, %v1110, 0.0
  %1119 = vadd.xlane.f32.xlu0 %v1118
  %v1120 = vpop.xlane.xlu0 %1119
  %v1121 = vsel %vm190, %v1111, 0.0
  %1122 = vadd.xlane.f32.xlu0 %v1121
  %v1123 = vpop.xlane.xlu0 %1122
  %v1124 = vsel %vm190, %v1112, 0.0
  %1125 = vadd.xlane.f32.xlu0 %v1124
  %v1126 = vpop.xlane.xlu0 %1125
  %v1127 = vsel %vm190, %v1113, 0.0
  %1128 = vadd.xlane.f32.xlu0 %v1127
  %v1129 = vpop.xlane.xlu0 %1128
  %v1130 = vsel %vm190, %v1114, 0.0
  %1131 = vadd.xlane.f32.xlu0 %v1130
  %v1132 = vpop.xlane.xlu0 %1131
  %v1133 = vsel %vm190, %v1115, 0.0
  %1134 = vadd.xlane.f32.xlu0 %v1133
  %v1135 = vpop.xlane.xlu0 %1134
  %v1136 = vsel %vm190, %v1116, 0.0
  %1137 = vadd.xlane.f32.xlu0 %v1136
  %v1138 = vpop.xlane.xlu0 %1137
  %v1139 = vsel %vm190, %v1117, 0.0
  %1140 = vadd.xlane.f32.xlu0 %v1139
  %v1141 = vpop.xlane.xlu0 %1140
  %v1142 = vmul.f32 %v1120, %v1093
  %v1143 = vmul.f32 %v1123, %v1093
  %v1144 = vmul.f32 %v1126, %v1093
  %v1145 = vmul.f32 %v1129, %v1093
  %v1146 = vmul.f32 %v1132, %v1093
  %v1147 = vmul.f32 %v1135, %v1093
  %v1148 = vmul.f32 %v1138, %v1093
  %v1149 = vmul.f32 %v1141, %v1093
  %v1150 = vadd.f32 %v1142, 1e-05
  %v1151 = vadd.f32 %v1143, 1e-05
  %v1152 = vadd.f32 %v1144, 1e-05
  %v1153 = vadd.f32 %v1145, 1e-05
  %v1154 = vadd.f32 %v1146, 1e-05
  %v1155 = vadd.f32 %v1147, 1e-05
  %v1156 = vadd.f32 %v1148, 1e-05
  %v1157 = vadd.f32 %v1149, 1e-05
  %v1158 = vrsqrt.pop %v1150
  %v1159 = vrsqrt.pop %v1151
  %v1160 = vrsqrt.pop %v1152
  %v1161 = vrsqrt.pop %v1153
  %v1162 = vrsqrt.pop %v1154
  %v1163 = vrsqrt.pop %v1155
  %v1164 = vrsqrt.pop %v1156
  %v1165 = vrsqrt.pop %v1157
  %v1166 = vmul.f32 %v1102, %v1158
  %v1167 = vmul.f32 %v1103, %v1159
  %v1168 = vmul.f32 %v1104, %v1160
  %v1169 = vmul.f32 %v1105, %v1161
  %v1170 = vmul.f32 %v1106, %v1162
  %v1171 = vmul.f32 %v1107, %v1163
  %v1172 = vmul.f32 %v1108, %v1164
  %v1173 = vmul.f32 %v1109, %v1165
  %v1174 = vld [vmem:[%s4] sm:$0x1]
  %v1175 = vlaneseq
  %v1176 = vshrl.u32 %v1175, 7
  %v1177 = vsub.s32 0, %v1176
  %v1178 = vrot.slane %v1174, %v1177
  %v1179 = vmul.f32 %v1166, %v1178
  %v1180 = vmul.f32 %v1167, %v1178
  %v1181 = vmul.f32 %v1168, %v1178
  %v1182 = vmul.f32 %v1169, %v1178
  %v1183 = vmul.f32 %v1170, %v1178
  %v1184 = vmul.f32 %v1171, %v1178
  %v1185 = vmul.f32 %v1172, %v1178
  %v1186 = vmul.f32 %v1173, %v1178
  %v1187 = vld [vmem:[%s4 + $0x1] sm:$0x1]
  %v1188 = vlaneseq
  %v1189 = vshrl.u32 %v1188, 7
  %v1190 = vsub.s32 0, %v1189
  %v1191 = vrot.slane %v1187, %v1190
  %v1192 = vadd.f32 %v1179, %v1191
  %v1193 = vadd.f32 %v1180, %v1191
  %v1194 = vadd.f32 %v1181, %v1191
  %v1195 = vadd.f32 %v1182, %v1191
  %v1196 = vadd.f32 %v1183, %v1191
  %v1197 = vadd.f32 %v1184, %v1191
  %v1198 = vadd.f32 %v1185, %v1191
  %v1199 = vadd.f32 %v1186, %v1191
  %v1200 = vld [vmem:[%s5] sm:$0xff]
  %v1201 = vld [vmem:[%s5 + $0x8] sm:$0xff]
  %v1202 = vld [vmem:[%s5 + $0x10] sm:$0xff]
  %v1203 = vld [vmem:[%s5 + $0x18] sm:$0xff]
  %v1204 = vld [vmem:[%s6] sm:$0x1]
  %v1206 = vlaneseq
  %v1207 = vshrl.u32 %v1206, 7
  %v1208 = vsub.s32 0, %v1207
  %v1209 = vrot.slane %v1204, %v1208
  %v1212 = vsel %vm190, %v1192, 0
  %v1215 = vsel %vm190, %v1193, 0
  %v1218 = vsel %vm190, %v1194, 0
  %v1221 = vsel %vm190, %v1195, 0
  %v1224 = vsel %vm190, %v1196, 0
  %v1227 = vsel %vm190, %v1197, 0
  %v1230 = vsel %vm190, %v1198, 0
  %v1233 = vsel %vm190, %v1199, 0
  %1235 = vmatprep.subr.mxu0 0.0
  %1236 = vmatpush1.msra.mxu0 %v1200
  %1237 = vmatprep.subr.mxu0 0.0
  %1238 = vmatpush1.msra.mxu0 %v1201
  %1239 = vmatprep.subr.mxu0 0.0
  %1240 = vmatpush1.msra.mxu0 %v1202
  %1241 = vmatprep.subr.mxu0 0.0
  %1242 = vmatpush1.msra.mxu0 %v1203
  %1243 = vmatprep.subr.mxu0 0.0
  %1244 = vmatpush1.msra.mxu0 0.0
  %1245 = vmatprep.subr.mxu0 0.0
  %1246 = vmatpush1.msra.mxu0 0.0
  %1247 = vmatprep.subr.mxu0 0.0
  %1248 = vmatpush1.msra.mxu0 0.0
  %1249 = vmatprep.subr.mxu0 0.0
  %1250 = vmatpush1.msra.mxu0 0.0
  %1251 = vmatprep.subr.mxu0 0.0
  %1252 = vmatpush1.msra.mxu0 0.0
  %1253 = vmatprep.subr.mxu0 0.0
  %1254 = vmatpush1.msra.mxu0 0.0
  %1255 = vmatprep.subr.mxu0 0.0
  %1256 = vmatpush1.msra.mxu0 0.0
  %1257 = vmatprep.subr.mxu0 0.0
  %1258 = vmatpush1.msra.mxu0 0.0
  %1259 = vmatprep.subr.mxu0 0.0
  %1260 = vmatpush1.msra.mxu0 0.0
  %1261 = vmatprep.subr.mxu0 0.0
  %1262 = vmatpush1.msra.mxu0 0.0
  %1263 = vmatprep.subr.mxu0 0.0
  %1264 = vmatpush1.msra.mxu0 0.0
  %1265 = vmatprep.subr.mxu0 0.0
  %1266 = vmatpush1.msra.mxu0 0.0
  %1267 = vmatprep.subr.mxu0 0.0
  %1268 = vmatpush1.msra.mxu0 0.0
  %1269 = vmatprep.subr.mxu0 0.0
  %1270 = vmatpush1.msra.mxu0 0.0
  %1271 = vmatprep.subr.mxu0 0.0
  %1272 = vmatpush1.msra.mxu0 0.0
  %1273 = vmatprep.subr.mxu0 0.0
  %1274 = vmatpush1.msra.mxu0 0.0
  %1275 = vmatprep.subr.mxu0 0.0
  %1276 = vmatpush1.msra.mxu0 0.0
  %1277 = vmatprep.subr.mxu0 0.0
  %1278 = vmatpush1.msra.mxu0 0.0
  %1279 = vmatprep.subr.mxu0 0.0
  %1280 = vmatpush1.msra.mxu0 0.0
  %1281 = vmatprep.subr.mxu0 0.0
  %1282 = vmatpush1.msra.mxu0 0.0
  %1283 = vmatprep.subr.mxu0 0.0
  %1284 = vmatpush1.msra.mxu0 0.0
  %1285 = vmatprep.subr.mxu0 0.0
  %1286 = vmatpush1.msra.mxu0 0.0
  %1287 = vmatprep.subr.mxu0 0.0
  %1288 = vmatpush1.msra.mxu0 0.0
  %1289 = vmatprep.subr.mxu0 0.0
  %1290 = vmatpush1.msra.mxu0 0.0
  %1291 = vmatprep.subr.mxu0 0.0
  %1292 = vmatpush1.msra.mxu0 0.0
  %1293 = vmatprep.subr.mxu0 0.0
  %1294 = vmatpush1.msra.mxu0 0.0
  %1295 = vmatprep.subr.mxu0 0.0
  %1296 = vmatpush1.msra.mxu0 0.0
  %1297 = vmatprep.subr.mxu0 0.0
  %1298 = vmatpush1.msra.mxu0 0.0
  %1299 = vmatprep.mubr.f32.mxu0 0.0
  %1300 = vmatmul.mubr.f32.gmra.mrb[0].mxu0 %v1212
  %v1301 = vpop.f32.mrb[0].mxu0
  %v1302 = vadd.f32 %v1209, %v1301
  %v1303 = vpop.f32.mrb[0].mxu0
  %1304 = vmatprep.mubr.f32.mxu0 0.0
  %1305 = vmatmul.mubr.f32.gmra.mrb[0].mxu0 %v1215
  %v1306 = vpop.f32.mrb[0].mxu0
  %v1307 = vadd.f32 %v1209, %v1306
  %v1308 = vpop.f32.mrb[0].mxu0
  %1309 = vmatprep.mubr.f32.mxu0 0.0
  %1310 = vmatmul.mubr.f32.gmra.mrb[0].mxu0 %v1218
  %v1311 = vpop.f32.mrb[0].mxu0
  %v1312 = vadd.f32 %v1209, %v1311
  %v1313 = vpop.f32.mrb[0].mxu0
  %1314 = vmatprep.mubr.f32.mxu0 0.0
  %1315 = vmatmul.mubr.f32.gmra.mrb[0].mxu0 %v1221
  %v1316 = vpop.f32.mrb[0].mxu0
  %v1317 = vadd.f32 %v1209, %v1316
  %v1318 = vpop.f32.mrb[0].mxu0
  %1319 = vmatprep.mubr.f32.mxu0 0.0
  %1320 = vmatmul.mubr.f32.gmra.mrb[0].mxu0 %v1224
  %v1321 = vpop.f32.mrb[0].mxu0
  %v1322 = vadd.f32 %v1209, %v1321
  %v1323 = vpop.f32.mrb[0].mxu0
  %1324 = vmatprep.mubr.f32.mxu0 0.0
  %1325 = vmatmul.mubr.f32.gmra.mrb[0].mxu0 %v1227
  %v1326 = vpop.f32.mrb[0].mxu0
  %v1327 = vadd.f32 %v1209, %v1326
  %v1328 = vpop.f32.mrb[0].mxu0
  %1329 = vmatprep.mubr.f32.mxu0 0.0
  %1330 = vmatmul.mubr.f32.gmra.mrb[0].mxu0 %v1230
  %v1331 = vpop.f32.mrb[0].mxu0
  %v1332 = vadd.f32 %v1209, %v1331
  %v1333 = vpop.f32.mrb[0].mxu0
  %1334 = vmatprep.mubr.f32.mxu0 0.0
  %1335 = vmatmul.mubr.f32.gmra.mrb[0].mxu0 %v1233
  %v1336 = vpop.f32.mrb[0].mxu0
  %v1337 = vadd.f32 %v1209, %v1336
  %v1338 = vpop.f32.mrb[0].mxu0
  %1339 = vdwg.mxu0
  %v1340 = vxor.u32 %v1302, 2147483648
  %v1341 = vxor.u32 %v1307, 2147483648
  %v1342 = vxor.u32 %v1312, 2147483648
  %v1343 = vxor.u32 %v1317, 2147483648
  %v1344 = vxor.u32 %v1322, 2147483648
  %v1345 = vxor.u32 %v1327, 2147483648
  %v1346 = vxor.u32 %v1332, 2147483648
  %v1347 = vxor.u32 %v1337, 2147483648
  %v1348 = vmul.f32 %v1340, 1.442695
  %v1349 = vpow.pop %v1348
  %v1350 = vmul.f32 %v1341, 1.442695
  %v1351 = vpow.pop %v1350
  %v1352 = vmul.f32 %v1342, 1.442695
  %v1353 = vpow.pop %v1352
  %v1354 = vmul.f32 %v1343, 1.442695
  %v1355 = vpow.pop %v1354
  %v1356 = vmul.f32 %v1344, 1.442695
  %v1357 = vpow.pop %v1356
  %v1358 = vmul.f32 %v1345, 1.442695
  %v1359 = vpow.pop %v1358
  %v1360 = vmul.f32 %v1346, 1.442695
  %v1361 = vpow.pop %v1360
  %v1362 = vmul.f32 %v1347, 1.442695
  %v1363 = vpow.pop %v1362
  %v1364 = vadd.f32 %v1349, 1.0
  %v1365 = vadd.f32 %v1351, 1.0
  %v1366 = vadd.f32 %v1353, 1.0
  %v1367 = vadd.f32 %v1355, 1.0
  %v1368 = vadd.f32 %v1357, 1.0
  %v1369 = vadd.f32 %v1359, 1.0
  %v1370 = vadd.f32 %v1361, 1.0
  %v1371 = vadd.f32 %v1363, 1.0
  %v1372 = vrcp.pop %v1364
  %v1373 = vmul.f32 1.0, %v1372
  %v1374 = vrcp.pop %v1365
  %v1375 = vmul.f32 1.0, %v1374
  %v1376 = vrcp.pop %v1366
  %v1377 = vmul.f32 1.0, %v1376
  %v1378 = vrcp.pop %v1367
  %v1379 = vmul.f32 1.0, %v1378
  %v1380 = vrcp.pop %v1368
  %v1381 = vmul.f32 1.0, %v1380
  %v1382 = vrcp.pop %v1369
  %v1383 = vmul.f32 1.0, %v1382
  %v1384 = vrcp.pop %v1370
  %v1385 = vmul.f32 1.0, %v1384
  %v1386 = vrcp.pop %v1371
  %v1387 = vmul.f32 1.0, %v1386
  %vm1388 = vcmask 64512
  %1389 = vst.msk [vmem:[%s7] sm:$0xff] %vm1388, %v1373
  %1390 = vst.msk [vmem:[%s7 + $0x8] sm:$0xff] %vm1388, %v1375
  %1391 = vst.msk [vmem:[%s7 + $0x10] sm:$0xff] %vm1388, %v1377
  %1392 = vst.msk [vmem:[%s7 + $0x18] sm:$0xff] %vm1388, %v1379
  %1393 = vst.msk [vmem:[%s7 + $0x20] sm:$0xff] %vm1388, %v1381
  %1394 = vst.msk [vmem:[%s7 + $0x28] sm:$0xff] %vm1388, %v1383
  %1395 = vst.msk [vmem:[%s7 + $0x30] sm:$0xff] %vm1388, %v1385
  %1396 = vst.msk [vmem:[%s7 + $0x38] sm:$0xff] %vm1388, %v1387
  // Predicated region
  $region30: #{tpu_custom_call.1} parent=0 // pred_check
    _
  $region31: #{tpu_custom_call.1} parent=0 // pred_check_branch
    %1398 = sbr.rel (0) target = $region33
  $region32: #{tpu_custom_call.1} parent=0 // pred_region
    _
  $region33: #{tpu_custom_call.1} parent=0 // pred_fallthru
    _
  // Predicated region
  $region34: #{tpu_custom_call.1} parent=0 // pred_check
    _
  $region35: #{tpu_custom_call.1} parent=0 // pred_check_branch
    %1400 = sbr.rel (0) target = $region37
  $region36: #{tpu_custom_call.1} parent=0 // pred_region
    _
  $region37: #{tpu_custom_call.1} parent=0 // pred_fallthru
    _

</llo_original>
